<compile_context>
chip_gen: v6e
topology: v6e:2x2x1
jax: 0.10.0
libtpu: 0.0.40
codegen_flags: <defaults>
</compile_context>

<pallas_src>
import functools
import math

import jax
import jax.numpy as jnp
from jax import lax
from jax.experimental import pallas as pl
from jax.experimental.pallas import tpu as pltpu


# ----------------------------- shared helpers --------------------------------
def _round_up(n, m):
    return -(-n // m) * m


def _layernorm(x, g, b, eps=1e-5):
    mu = jnp.mean(x, axis=-1, keepdims=True)
    var = jnp.mean((x - mu) ** 2, axis=-1, keepdims=True)
    return (x - mu) * lax.rsqrt(var + eps) * g + b


# rows of the consolidated f32 bias / LayerNorm-vector slab
(_V_B1B, _V_B234, _V_B1C, _V_BQKV, _V_BO, _V_G1, _V_BE1,
 _V_BFF1, _V_BFF2, _V_G2, _V_BE2, _V_BC, _N_VEC_ROWS) = range(13)

# order of the packed weight operands handed to pallas_call (after x)
PACKED_ORDER = ["wL1", "w1b", "wL2b", "w1c", "wsm", "wff2", "vecs"]


# --------------------------------- the kernel --------------------------------
def netfusion_kernel(x_ref, wl1_ref, w1b_ref, wl2b_ref, w1c_ref,
                     wsm_ref, wff2_ref, vec_ref, y_ref,
                     *, nz, dz, dff, h1_w, h234_w, out_lanes):
    f32, bf16 = jnp.float32, jnp.bfloat16
    relu = lambda t: jnp.maximum(t, 0.0)

    def vec(row, width):                       # (1, width) f32 bias / gamma / beta
        return vec_ref[row:row + 1, 0:width]

    def bdot(a, w_bf16):                       # bf16 MXU operands, f32 accumulate
        return jnp.dot(a.astype(bf16), w_bf16, preferred_element_type=f32)

    x = x_ref[...]                                             # (N, A+B+C+D) f32

    # ---- fused per-view encoders (dropout = identity in eval mode) ----
    h = relu(bdot(x, wl1_ref[...]))                            # (N, 500 + 3*300)
    h1 = h[:, :h1_w]                                           # encoder-1 hidden
    h234 = h[:, h1_w:h1_w + h234_w]                            # encoders 2/3/4
    m1 = relu(bdot(h1, w1b_ref[...]) + vec(_V_B1B, w1b_ref.shape[1]))
    z234 = relu(bdot(h234, wl2b_ref[...]) + vec(_V_B234, 3 * dz))
    z1 = relu(bdot(m1, w1c_ref[...]) + vec(_V_B1C, dz))
    z = jnp.concatenate([z1, z234], axis=-1)                   # (N, nz)

    # ---- TransformerEncoderLayer (post-norm, nhead=1, dropout=identity) ----
    qkv = bdot(z, wsm_ref[:, 0:128]) + vec(_V_BQKV, 128)       # pad lanes stay 0
    q = qkv[:, 0:nz]
    k = qkv[:, nz:2 * nz]
    v = qkv[:, 2 * nz:3 * nz]
    s = lax.dot_general(q, k, (((1,), (1,)), ((), ())),
                        preferred_element_type=f32) * (1.0 / math.sqrt(nz))
    s = s - jnp.max(s, axis=-1, keepdims=True)
    e = jnp.exp(s)
    # reciprocal on the EUP slot (otherwise idle) instead of a VALU divide
    attn = e * pl.reciprocal(jnp.sum(e, axis=-1, keepdims=True), approx=True)
    ctx = jnp.dot(attn, v, preferred_element_type=f32)
    ctx = bdot(ctx, wsm_ref[:, 128:256])[:, 0:nz] + vec(_V_BO, nz)

    src = _layernorm(z + ctx, vec(_V_G1, nz), vec(_V_BE1, nz))
    ff = relu(bdot(src, wsm_ref[:, 256:256 + dff]) + vec(_V_BFF1, dff))
    ff = bdot(ff, wff2_ref[...]) + vec(_V_BFF2, nz)
    src = _layernorm(src + ff, vec(_V_G2, nz), vec(_V_BE2, nz))

    # transpose(0,1).mean(dim=0) over the size-1 batch axis == identity.
    # classifier weight lane-padded to out_lanes -> dense (unmasked) store.
    y_ref[...] = jax.nn.sigmoid(
        bdot(src, wsm_ref[:, 256 + dff:256 + dff + out_lanes])
        + vec(_V_BC, out_lanes))


# ------------------------------ host-side packing -----------------------------
def _block_diag(*mats):
    rows = sum(m.shape[0] for m in mats)
    cols = sum(m.shape[1] for m in mats)
    out = jnp.zeros((rows, cols), jnp.float32)
    r = c = 0
    for m in mats:
        out = out.at[r:r + m.shape[0], c:c + m.shape[1]].set(m)
        r += m.shape[0]
        c += m.shape[1]
    return out


def pack_params(p, nz, n_view, n_clusters):
    """Pack the per-layer parameter dict into the 7 operands the kernel wants.

    Weight matrices -> bfloat16 (DMA bytes are the whole kernel cost); bias /
    LayerNorm vectors stay f32.  Encoder-1's 500x300 layer is kept dense on its
    own (a 1400-row block-diag would be ~65% zeros); encoders 2-4's second
    layers stay block-diagonal so z2|z3|z4 come out pre-concatenated.
    """
    bf16 = jnp.bfloat16
    dz = nz // n_view
    dff = p["wff1"].shape[1]
    out_lanes = _round_up(max(n_clusters, 1), 128)

    def pad_lanes(w, width):
        return jnp.zeros((w.shape[0], width), jnp.float32).at[:, :w.shape[1]].set(w)

    # one bf16 lane-slab for every nz-row matrix, 128-aligned sub-blocks:
    #   [0,128) packed q/k/v in-proj | [128,256) out-proj | [256,256+dff) ff1
    #   | [256+dff, 256+dff+out_lanes) lane-padded classifier
    wqkv = jnp.concatenate([p["wq"], p["wk"], p["wv"]], axis=-1)       # (nz, 3nz)
    wsm = jnp.concatenate([
        pad_lanes(wqkv, 128),
        pad_lanes(p["wo"], 128),
        p["wff1"],
        pad_lanes(p["wc"], out_lanes),
    ], axis=-1).astype(bf16)

    # one f32 slab for every bias / gamma / beta vector (one per row)
    vec_w = _round_up(max(p["b1b"].shape[-1], dff, out_lanes, 128), 128)
    vecs = jnp.zeros((_round_up(_N_VEC_ROWS, 8), vec_w), jnp.float32)
    entries = {
        _V_B1B: p["b1b"],
        _V_B234: jnp.concatenate([p["b2b"], p["b3b"], p["b4b"]], axis=-1),
        _V_B1C: p["b1c"],
        _V_BQKV: jnp.concatenate([p["bq"], p["bk"], p["bv"]], axis=-1),
        _V_BO: p["bo"],
        _V_G1: p["g1"], _V_BE1: p["be1"],
        _V_BFF1: p["bff1"], _V_BFF2: p["bff2"],
        _V_G2: p["g2"], _V_BE2: p["be2"],
        _V_BC: p["bc"],
    }
    for row, v in entries.items():
        vecs = vecs.at[row, :v.shape[-1]].set(v.reshape(-1))

    return {
        "wL1": _block_diag(p["w1a"], p["w2a"], p["w3a"], p["w4a"]).astype(bf16),
        "w1b": p["w1b"].astype(bf16),
        "wL2b": _block_diag(p["w2b"], p["w3b"], p["w4b"]).astype(bf16),
        "w1c": p["w1c"].astype(bf16),
        "wsm": wsm,
        "wff2": p["wff2"].astype(bf16),
        "vecs": vecs,
    }


# --------------------------------- wrapper -----------------------------------
def _padded_vmem_bytes(arrs):
    total = 0
    for a in arrs:
        shp = tuple(a.shape) if len(a.shape) >= 2 else (1,) + tuple(a.shape)
        itemsize = jnp.dtype(a.dtype).itemsize
        sub = 8 * max(1, 4 // itemsize)          # packed-sublane tile height
        lead = math.prod(shp[:-2]) if len(shp) > 2 else 1
        total += lead * _round_up(shp[-2], sub) * _round_up(shp[-1], 128) * itemsize
    return total


def netfusion_forward(xs, packed, nz, n_view, n_clusters):
    # concat inputs host-side so the fused block-diagonal L1 matmul sees one slab
    x = jnp.concatenate(xs, axis=-1)
    n, d_in = x.shape
    dz = nz // n_view
    dff = packed["wff2"].shape[0]
    out_lanes = _round_up(max(n_clusters, 1), 128)
    args = [x] + [packed[k] for k in PACKED_ORDER]
    out_sds = jax.ShapeDtypeStruct((n, out_lanes), jnp.float32)

    kernel = functools.partial(
        netfusion_kernel, nz=nz, dz=dz, dff=dff,
        h1_w=packed["w1b"].shape[0], h234_w=packed["wL2b"].shape[0],
        out_lanes=out_lanes)

    # VMEM request: tile-padded operand footprint x2 (intermediates) + headroom,
    # clamped generation-aware (never the whole physical VMEM).
    try:
        vmem_cap = int(pltpu.get_tpu_info().vmem_capacity_bytes)
    except Exception:
        vmem_cap = 64 << 20
    footprint = _padded_vmem_bytes(args + [out_sds])
    vmem_bytes = min(2 * footprint + (8 << 20), int(0.75 * vmem_cap))

    # advisory cost estimate so XLA schedules around this tiny DMA-bound call
    mm_ws = [packed[k] for k in ("wL1", "w1b", "wL2b", "w1c", "wsm", "wff2")]
    flops = 2 * n * sum(int(w.shape[0]) * int(w.shape[1]) for w in mm_ws)
    flops += 2 * n * n * 2 * nz                          # q@k^T and attn@v
    transcendentals = n * n + n * out_lanes + 4 * n      # exp + sigmoid + rsqrt
    bytes_accessed = (sum(int(a.size) * jnp.dtype(a.dtype).itemsize for a in args)
                      + n * out_lanes * 4)

    vmem = pltpu.MemorySpace.VMEM
    y = pl.pallas_call(
        kernel,
        out_shape=out_sds,
        in_specs=[pl.BlockSpec(memory_space=vmem) for _ in args],
        out_specs=pl.BlockSpec(memory_space=vmem),
        compiler_params=pltpu.CompilerParams(vmem_limit_bytes=vmem_bytes),
        cost_estimate=pl.CostEstimate(flops=flops,
                                      transcendentals=transcendentals,
                                      bytes_accessed=bytes_accessed),
    )(*args)
    return y[:, :n_clusters]


# ----------------------- pure-JAX reference (unpacked params) -----------------
def _qlinear(x, w, b=None):
    # matches the kernel's MXU quantization: bf16 operands, f32 accumulation
    y = jnp.dot(x.astype(jnp.bfloat16), w.astype(jnp.bfloat16),
                preferred_element_type=jnp.float32)
    return y if b is None else y + b


def netfusion_reference(xs, p):
    relu = lambda t: jnp.maximum(t, 0.0)
    hi = lax.Precision.HIGHEST
    x1, x2, x3, x4 = xs
    h1 = relu(_qlinear(x1, p["w1a"]))
    m1 = relu(_qlinear(h1, p["w1b"], p["b1b"]))
    z1 = relu(_qlinear(m1, p["w1c"], p["b1c"]))
    z2 = relu(_qlinear(relu(_qlinear(x2, p["w2a"])), p["w2b"], p["b2b"]))
    z3 = relu(_qlinear(relu(_qlinear(x3, p["w3a"])), p["w3b"], p["b3b"]))
    z4 = relu(_qlinear(relu(_qlinear(x4, p["w4a"])), p["w4b"], p["b4b"]))
    z = jnp.concatenate([z1, z2, z3, z4], axis=-1)
    nz = z.shape[-1]
    q = _qlinear(z, p["wq"], p["bq"])
    k = _qlinear(z, p["wk"], p["bk"])
    v = _qlinear(z, p["wv"], p["bv"])
    s = jnp.matmul(q, k.T, precision=hi) / math.sqrt(nz)
    s = s - jnp.max(s, axis=-1, keepdims=True)
    e = jnp.exp(s)
    attn = e / jnp.sum(e, axis=-1, keepdims=True)
    ctx = _qlinear(jnp.matmul(attn, v, precision=hi), p["wo"], p["bo"])
    src = _layernorm(z + ctx, p["g1"], p["be1"])
    ff = _qlinear(relu(_qlinear(src, p["wff1"], p["bff1"])), p["wff2"], p["bff2"])
    src = _layernorm(src + ff, p["g2"], p["be2"])
    return jax.nn.sigmoid(_qlinear(src, p["wc"], p["bc"]))


# ------------------------------ parameter init --------------------------------
def _xavier(key, fan_in, fan_out, gain=math.sqrt(2.0)):
    std = gain * math.sqrt(2.0 / (fan_in + fan_out))
    return std * jax.random.normal(key, (fan_in, fan_out), jnp.float32)


def init_params(key, A, B, C, D, nz, n_view, n_clusters):
    dz = nz // n_view
    ks = iter(jax.random.split(key, 64))
    bias = lambda k, d: 0.01 * jax.random.normal(k, (1, d), jnp.float32)
    return {
        # encoder1
        "w1a": _xavier(next(ks), A, 500), "w1b": _xavier(next(ks), 500, 300),
        "b1b": bias(next(ks), 300),
        "w1c": _xavier(next(ks), 300, dz), "b1c": bias(next(ks), dz),
        # encoder2/3/4
        "w2a": _xavier(next(ks), B, 300), "w2b": _xavier(next(ks), 300, dz),
        "b2b": bias(next(ks), dz),
        "w3a": _xavier(next(ks), C, 300), "w3b": _xavier(next(ks), 300, dz),
        "b3b": bias(next(ks), dz),
        "w4a": _xavier(next(ks), D, 300), "w4b": _xavier(next(ks), 300, dz),
        "b4b": bias(next(ks), dz),
        # transformer encoder layer (nhead=1, dim_feedforward=256)
        "wq": _xavier(next(ks), nz, nz), "bq": bias(next(ks), nz),
        "wk": _xavier(next(ks), nz, nz), "bk": bias(next(ks), nz),
        "wv": _xavier(next(ks), nz, nz), "bv": bias(next(ks), nz),
        "wo": _xavier(next(ks), nz, nz), "bo": bias(next(ks), nz),
        "g1": jnp.ones((1, nz), jnp.float32), "be1": jnp.zeros((1, nz), jnp.float32),
        "wff1": _xavier(next(ks), nz, 256), "bff1": bias(next(ks), 256),
        "wff2": _xavier(next(ks), 256, nz), "bff2": bias(next(ks), nz),
        "g2": jnp.ones((1, nz), jnp.float32), "be2": jnp.zeros((1, nz), jnp.float32),
        # cls head
        "wc": _xavier(next(ks), nz, n_clusters), "bc": bias(next(ks), n_clusters),
    }


# ----------------------------------- main -------------------------------------
if __name__ == "__main__":
    N = 8
    A, B, C, D = 32, 24, 20, 16
    nz, n_view, n_clusters = 32, 4, 4

    key = jax.random.PRNGKey(0)
    kx1, kx2, kx3, kx4, kp = jax.random.split(key, 5)
    xs = (
        jax.random.uniform(kx1, (N, A), jnp.float32),
        jax.random.uniform(kx2, (N, B), jnp.float32),
        jax.random.uniform(kx3, (N, C), jnp.float32),
        jax.random.uniform(kx4, (N, D), jnp.float32),
    )
    params = init_params(kp, A, B, C, D, nz, n_view, n_clusters)
    packed = pack_params(params, nz, n_view, n_clusters)

    y = jax.block_until_ready(netfusion_forward(xs, packed, nz, n_view, n_clusters))
    y_ref = jax.block_until_ready(netfusion_reference(xs, params))

    assert y.shape == (N, n_clusters), y.shape
    # kernel and reference share the same bf16-weight quantization; residual
    # tolerance covers the EUP approximate reciprocal and accumulation-order
    # differences from the block-diagonal packing.
    err = float(jnp.max(jnp.abs(y - y_ref)))
    assert jnp.allclose(y, y_ref, atol=5e-3, rtol=5e-3), err
    print("KERNEL_OK")
</pallas_src>

<mosaic_0001>
module attributes {stable_mosaic.version = 11 : i64} {
  func.func @netfusion_kernel(%arg0: memref<8x92xf32, #tpu.memory_space<vmem>>, %arg1: memref<92x1400xbf16, #tpu.memory_space<vmem>>, %arg2: memref<500x300xbf16, #tpu.memory_space<vmem>>, %arg3: memref<900x24xbf16, #tpu.memory_space<vmem>>, %arg4: memref<300x8xbf16, #tpu.memory_space<vmem>>, %arg5: memref<32x640xbf16, #tpu.memory_space<vmem>>, %arg6: memref<256x32xbf16, #tpu.memory_space<vmem>>, %arg7: memref<16x384xf32, #tpu.memory_space<vmem>>, %arg8: memref<8x128xf32, #tpu.memory_space<vmem>>) attributes {dimension_semantics = [], scalar_prefetch = 0 : i64, scratch_operands = 0 : i64, tpu.core_type = #tpu.core_type<tc>} {
    %c0 = arith.constant 0 : index
    %c0_0 = arith.constant 0 : index
    %0 = vector.load %arg0[%c0, %c0_0] : memref<8x92xf32, #tpu.memory_space<vmem>>, vector<8x92xf32>
    %c0_1 = arith.constant 0 : index
    %c0_2 = arith.constant 0 : index
    %1 = vector.load %arg1[%c0_1, %c0_2] : memref<92x1400xbf16, #tpu.memory_space<vmem>>, vector<92x1400xbf16>
    %2 = arith.truncf %0 : vector<8x92xf32> to vector<8x92xbf16>
    %cst = arith.constant dense<0.000000e+00> : vector<8x1400xf32>
    %3 = tpu.matmul %2, %1, %cst {dimension_numbers = #tpu.dot_dimension_numbers<[1], [0], [0], [1], [0, 0, 1, 1], [], []>} : vector<8x92xbf16>, vector<92x1400xbf16>, vector<8x1400xf32> -> vector<8x1400xf32>
    %cst_3 = arith.constant 0.000000e+00 : f32
    %4 = vector.broadcast %cst_3 : f32 to vector<8x1400xf32>
    %5 = arith.maximumf %3, %4 : vector<8x1400xf32>
    %6 = vector.extract_strided_slice %5 {offsets = [0, 0], sizes = [8, 500], strides = [1, 1]} : vector<8x1400xf32> to vector<8x500xf32>
    %7 = vector.extract_strided_slice %5 {offsets = [0, 500], sizes = [8, 900], strides = [1, 1]} : vector<8x1400xf32> to vector<8x900xf32>
    %c0_4 = arith.constant 0 : index
    %c0_5 = arith.constant 0 : index
    %8 = vector.load %arg2[%c0_4, %c0_5] : memref<500x300xbf16, #tpu.memory_space<vmem>>, vector<500x300xbf16>
    %9 = arith.truncf %6 : vector<8x500xf32> to vector<8x500xbf16>
    %cst_6 = arith.constant dense<0.000000e+00> : vector<8x300xf32>
    %10 = tpu.matmul %9, %8, %cst_6 {dimension_numbers = #tpu.dot_dimension_numbers<[1], [0], [0], [1], [0, 0, 1, 1], [], []>} : vector<8x500xbf16>, vector<500x300xbf16>, vector<8x300xf32> -> vector<8x300xf32>
    %c0_7 = arith.constant 0 : index
    %c0_8 = arith.constant 0 : index
    %11 = vector.load %arg7[%c0_7, %c0_8] : memref<16x384xf32, #tpu.memory_space<vmem>>, vector<1x300xf32>
    %12 = vector.broadcast %11 : vector<1x300xf32> to vector<8x300xf32>
    %13 = arith.addf %10, %12 : vector<8x300xf32>
    %cst_9 = arith.constant 0.000000e+00 : f32
    %14 = vector.broadcast %cst_9 : f32 to vector<8x300xf32>
    %15 = arith.maximumf %13, %14 : vector<8x300xf32>
    %c0_10 = arith.constant 0 : index
    %c0_11 = arith.constant 0 : index
    %16 = vector.load %arg3[%c0_10, %c0_11] : memref<900x24xbf16, #tpu.memory_space<vmem>>, vector<900x24xbf16>
    %17 = arith.truncf %7 : vector<8x900xf32> to vector<8x900xbf16>
    %cst_12 = arith.constant dense<0.000000e+00> : vector<8x24xf32>
    %18 = tpu.matmul %17, %16, %cst_12 {dimension_numbers = #tpu.dot_dimension_numbers<[1], [0], [0], [1], [0, 0, 1, 1], [], []>} : vector<8x900xbf16>, vector<900x24xbf16>, vector<8x24xf32> -> vector<8x24xf32>
    %c1 = arith.constant 1 : index
    %c0_13 = arith.constant 0 : index
    %19 = vector.load %arg7[%c1, %c0_13] : memref<16x384xf32, #tpu.memory_space<vmem>>, vector<1x24xf32>
    %20 = vector.broadcast %19 : vector<1x24xf32> to vector<8x24xf32>
    %21 = arith.addf %18, %20 : vector<8x24xf32>
    %cst_14 = arith.constant 0.000000e+00 : f32
    %22 = vector.broadcast %cst_14 : f32 to vector<8x24xf32>
    %23 = arith.maximumf %21, %22 : vector<8x24xf32>
    %c0_15 = arith.constant 0 : index
    %c0_16 = arith.constant 0 : index
    %24 = vector.load %arg4[%c0_15, %c0_16] : memref<300x8xbf16, #tpu.memory_space<vmem>>, vector<300x8xbf16>
    %25 = arith.truncf %15 : vector<8x300xf32> to vector<8x300xbf16>
    %cst_17 = arith.constant dense<0.000000e+00> : vector<8x8xf32>
    %26 = tpu.matmul %25, %24, %cst_17 {dimension_numbers = #tpu.dot_dimension_numbers<[1], [0], [0], [1], [0, 0, 1, 1], [], []>} : vector<8x300xbf16>, vector<300x8xbf16>, vector<8x8xf32> -> vector<8x8xf32>
    %c2 = arith.constant 2 : index
    %c0_18 = arith.constant 0 : index
    %27 = vector.load %arg7[%c2, %c0_18] : memref<16x384xf32, #tpu.memory_space<vmem>>, vector<1x8xf32>
    %28 = vector.broadcast %27 : vector<1x8xf32> to vector<8x8xf32>
    %29 = arith.addf %26, %28 : vector<8x8xf32>
    %cst_19 = arith.constant 0.000000e+00 : f32
    %30 = vector.broadcast %cst_19 : f32 to vector<8x8xf32>
    %31 = arith.maximumf %29, %30 : vector<8x8xf32>
    %32 = tpu.concatenate %31, %23 in 1 : vector<8x8xf32>, vector<8x24xf32> -> vector<8x32xf32>
    %c0_20 = arith.constant 0 : index
    %c0_21 = arith.constant 0 : index
    %33 = vector.load %arg5[%c0_20, %c0_21] : memref<32x640xbf16, #tpu.memory_space<vmem>>, vector<32x128xbf16>
    %34 = arith.truncf %32 : vector<8x32xf32> to vector<8x32xbf16>
    %cst_22 = arith.constant dense<0.000000e+00> : vector<8x128xf32>
    %35 = tpu.matmul %34, %33, %cst_22 {dimension_numbers = #tpu.dot_dimension_numbers<[1], [0], [0], [1], [0, 0, 1, 1], [], []>} : vector<8x32xbf16>, vector<32x128xbf16>, vector<8x128xf32> -> vector<8x128xf32>
    %c3 = arith.constant 3 : index
    %c0_23 = arith.constant 0 : index
    %36 = vector.load %arg7[%c3, %c0_23] : memref<16x384xf32, #tpu.memory_space<vmem>>, vector<1x128xf32>
    %37 = vector.broadcast %36 : vector<1x128xf32> to vector<8x128xf32>
    %38 = arith.addf %35, %37 : vector<8x128xf32>
    %39 = vector.extract_strided_slice %38 {offsets = [0, 0], sizes = [8, 32], strides = [1, 1]} : vector<8x128xf32> to vector<8x32xf32>
    %40 = vector.extract_strided_slice %38 {offsets = [0, 32], sizes = [8, 32], strides = [1, 1]} : vector<8x128xf32> to vector<8x32xf32>
    %41 = vector.extract_strided_slice %38 {offsets = [0, 64], sizes = [8, 32], strides = [1, 1]} : vector<8x128xf32> to vector<8x32xf32>
    %cst_24 = arith.constant dense<0.000000e+00> : vector<8x8xf32>
    %42 = tpu.matmul %39, %40, %cst_24 {dimension_numbers = #tpu.dot_dimension_numbers<[1], [1], [0], [0], [0, 0, 1, 0], [], []>} : vector<8x32xf32>, vector<8x32xf32>, vector<8x8xf32> -> vector<8x8xf32>
    %cst_25 = arith.constant 0.176776692 : f32
    %43 = vector.broadcast %cst_25 : f32 to vector<8x8xf32>
    %44 = arith.mulf %42, %43 : vector<8x8xf32>
    %cst_26 = arith.constant dense<0xFF800000> : vector<8xf32>
    %45 = vector.multi_reduction <maximumf>, %44, %cst_26 [1] : vector<8x8xf32> to vector<8xf32>
    %46 = vector.shape_cast %45 : vector<8xf32> to vector<8x1xf32>
    %47 = vector.broadcast %46 : vector<8x1xf32> to vector<8x8xf32>
    %48 = arith.subf %44, %47 : vector<8x8xf32>
    %49 = math.exp %48 : vector<8x8xf32>
    %cst_27 = arith.constant dense<0.000000e+00> : vector<8xf32>
    %50 = vector.multi_reduction <add>, %49, %cst_27 [1] : vector<8x8xf32> to vector<8xf32>
    %51 = vector.shape_cast %50 : vector<8xf32> to vector<8x1xf32>
    %52 = tpu.reciprocal %51 {approx = true} : vector<8x1xf32> -> vector<8x1xf32>
    %53 = vector.broadcast %52 : vector<8x1xf32> to vector<8x8xf32>
    %54 = arith.mulf %49, %53 : vector<8x8xf32>
    %cst_28 = arith.constant dense<0.000000e+00> : vector<8x32xf32>
    %55 = tpu.matmul %54, %41, %cst_28 {dimension_numbers = #tpu.dot_dimension_numbers<[1], [0], [0], [1], [0, 0, 1, 1], [], []>} : vector<8x8xf32>, vector<8x32xf32>, vector<8x32xf32> -> vector<8x32xf32>
    %c0_29 = arith.constant 0 : index
    %c128 = arith.constant 128 : index
    %56 = vector.load %arg5[%c0_29, %c128] : memref<32x640xbf16, #tpu.memory_space<vmem>>, vector<32x128xbf16>
    %57 = arith.truncf %55 : vector<8x32xf32> to vector<8x32xbf16>
    %cst_30 = arith.constant dense<0.000000e+00> : vector<8x128xf32>
    %58 = tpu.matmul %57, %56, %cst_30 {dimension_numbers = #tpu.dot_dimension_numbers<[1], [0], [0], [1], [0, 0, 1, 1], [], []>} : vector<8x32xbf16>, vector<32x128xbf16>, vector<8x128xf32> -> vector<8x128xf32>
    %59 = vector.extract_strided_slice %58 {offsets = [0, 0], sizes = [8, 32], strides = [1, 1]} : vector<8x128xf32> to vector<8x32xf32>
    %c4 = arith.constant 4 : index
    %c0_31 = arith.constant 0 : index
    %60 = vector.load %arg7[%c4, %c0_31] : memref<16x384xf32, #tpu.memory_space<vmem>>, vector<1x32xf32>
    %61 = vector.broadcast %60 : vector<1x32xf32> to vector<8x32xf32>
    %62 = arith.addf %59, %61 : vector<8x32xf32>
    %63 = arith.addf %32, %62 : vector<8x32xf32>
    %c5 = arith.constant 5 : index
    %c0_32 = arith.constant 0 : index
    %64 = vector.load %arg7[%c5, %c0_32] : memref<16x384xf32, #tpu.memory_space<vmem>>, vector<1x32xf32>
    %c6 = arith.constant 6 : index
    %c0_33 = arith.constant 0 : index
    %65 = vector.load %arg7[%c6, %c0_33] : memref<16x384xf32, #tpu.memory_space<vmem>>, vector<1x32xf32>
    %cst_34 = arith.constant dense<0.000000e+00> : vector<8xf32>
    %66 = vector.multi_reduction <add>, %63, %cst_34 [1] : vector<8x32xf32> to vector<8xf32>
    %67 = vector.shape_cast %66 : vector<8xf32> to vector<8x1xf32>
    %cst_35 = arith.constant 3.200000e+01 : f32
    %68 = vector.broadcast %cst_35 : f32 to vector<8x1xf32>
    %69 = arith.divf %67, %68 : vector<8x1xf32>
    %70 = vector.broadcast %69 : vector<8x1xf32> to vector<8x32xf32>
    %71 = arith.subf %63, %70 : vector<8x32xf32>
    %72 = arith.mulf %71, %71 : vector<8x32xf32>
    %cst_36 = arith.constant dense<0.000000e+00> : vector<8xf32>
    %73 = vector.multi_reduction <add>, %72, %cst_36 [1] : vector<8x32xf32> to vector<8xf32>
    %74 = vector.shape_cast %73 : vector<8xf32> to vector<8x1xf32>
    %cst_37 = arith.constant 3.200000e+01 : f32
    %75 = vector.broadcast %cst_37 : f32 to vector<8x1xf32>
    %76 = arith.divf %74, %75 : vector<8x1xf32>
    %77 = vector.broadcast %69 : vector<8x1xf32> to vector<8x32xf32>
    %78 = arith.subf %63, %77 : vector<8x32xf32>
    %cst_38 = arith.constant 9.99999974E-6 : f32
    %79 = vector.broadcast %cst_38 : f32 to vector<8x1xf32>
    %80 = arith.addf %76, %79 : vector<8x1xf32>
    %81 = math.rsqrt %80 : vector<8x1xf32>
    %82 = vector.broadcast %81 : vector<8x1xf32> to vector<8x32xf32>
    %83 = arith.mulf %78, %82 : vector<8x32xf32>
    %84 = vector.broadcast %64 : vector<1x32xf32> to vector<8x32xf32>
    %85 = arith.mulf %83, %84 : vector<8x32xf32>
    %86 = vector.broadcast %65 : vector<1x32xf32> to vector<8x32xf32>
    %87 = arith.addf %85, %86 : vector<8x32xf32>
    %c0_39 = arith.constant 0 : index
    %c256 = arith.constant 256 : index
    %88 = vector.load %arg5[%c0_39, %c256] : memref<32x640xbf16, #tpu.memory_space<vmem>>, vector<32x256xbf16>
    %89 = arith.truncf %87 : vector<8x32xf32> to vector<8x32xbf16>
    %cst_40 = arith.constant dense<0.000000e+00> : vector<8x256xf32>
    %90 = tpu.matmul %89, %88, %cst_40 {dimension_numbers = #tpu.dot_dimension_numbers<[1], [0], [0], [1], [0, 0, 1, 1], [], []>} : vector<8x32xbf16>, vector<32x256xbf16>, vector<8x256xf32> -> vector<8x256xf32>
    %c7 = arith.constant 7 : index
    %c0_41 = arith.constant 0 : index
    %91 = vector.load %arg7[%c7, %c0_41] : memref<16x384xf32, #tpu.memory_space<vmem>>, vector<1x256xf32>
    %92 = vector.broadcast %91 : vector<1x256xf32> to vector<8x256xf32>
    %93 = arith.addf %90, %92 : vector<8x256xf32>
    %cst_42 = arith.constant 0.000000e+00 : f32
    %94 = vector.broadcast %cst_42 : f32 to vector<8x256xf32>
    %95 = arith.maximumf %93, %94 : vector<8x256xf32>
    %c0_43 = arith.constant 0 : index
    %c0_44 = arith.constant 0 : index
    %96 = vector.load %arg6[%c0_43, %c0_44] : memref<256x32xbf16, #tpu.memory_space<vmem>>, vector<256x32xbf16>
    %97 = arith.truncf %95 : vector<8x256xf32> to vector<8x256xbf16>
    %cst_45 = arith.constant dense<0.000000e+00> : vector<8x32xf32>
    %98 = tpu.matmul %97, %96, %cst_45 {dimension_numbers = #tpu.dot_dimension_numbers<[1], [0], [0], [1], [0, 0, 1, 1], [], []>} : vector<8x256xbf16>, vector<256x32xbf16>, vector<8x32xf32> -> vector<8x32xf32>
    %c8 = arith.constant 8 : index
    %c0_46 = arith.constant 0 : index
    %99 = vector.load %arg7[%c8, %c0_46] : memref<16x384xf32, #tpu.memory_space<vmem>>, vector<1x32xf32>
    %100 = vector.broadcast %99 : vector<1x32xf32> to vector<8x32xf32>
    %101 = arith.addf %98, %100 : vector<8x32xf32>
    %102 = arith.addf %87, %101 : vector<8x32xf32>
    %c9 = arith.constant 9 : index
    %c0_47 = arith.constant 0 : index
    %103 = vector.load %arg7[%c9, %c0_47] : memref<16x384xf32, #tpu.memory_space<vmem>>, vector<1x32xf32>
    %c10 = arith.constant 10 : index
    %c0_48 = arith.constant 0 : index
    %104 = vector.load %arg7[%c10, %c0_48] : memref<16x384xf32, #tpu.memory_space<vmem>>, vector<1x32xf32>
    %cst_49 = arith.constant dense<0.000000e+00> : vector<8xf32>
    %105 = vector.multi_reduction <add>, %102, %cst_49 [1] : vector<8x32xf32> to vector<8xf32>
    %106 = vector.shape_cast %105 : vector<8xf32> to vector<8x1xf32>
    %cst_50 = arith.constant 3.200000e+01 : f32
    %107 = vector.broadcast %cst_50 : f32 to vector<8x1xf32>
    %108 = arith.divf %106, %107 : vector<8x1xf32>
    %109 = vector.broadcast %108 : vector<8x1xf32> to vector<8x32xf32>
    %110 = arith.subf %102, %109 : vector<8x32xf32>
    %111 = arith.mulf %110, %110 : vector<8x32xf32>
    %cst_51 = arith.constant dense<0.000000e+00> : vector<8xf32>
    %112 = vector.multi_reduction <add>, %111, %cst_51 [1] : vector<8x32xf32> to vector<8xf32>
    %113 = vector.shape_cast %112 : vector<8xf32> to vector<8x1xf32>
    %cst_52 = arith.constant 3.200000e+01 : f32
    %114 = vector.broadcast %cst_52 : f32 to vector<8x1xf32>
    %115 = arith.divf %113, %114 : vector<8x1xf32>
    %116 = vector.broadcast %108 : vector<8x1xf32> to vector<8x32xf32>
    %117 = arith.subf %102, %116 : vector<8x32xf32>
    %cst_53 = arith.constant 9.99999974E-6 : f32
    %118 = vector.broadcast %cst_53 : f32 to vector<8x1xf32>
    %119 = arith.addf %115, %118 : vector<8x1xf32>
    %120 = math.rsqrt %119 : vector<8x1xf32>
    %121 = vector.broadcast %120 : vector<8x1xf32> to vector<8x32xf32>
    %122 = arith.mulf %117, %121 : vector<8x32xf32>
    %123 = vector.broadcast %103 : vector<1x32xf32> to vector<8x32xf32>
    %124 = arith.mulf %122, %123 : vector<8x32xf32>
    %125 = vector.broadcast %104 : vector<1x32xf32> to vector<8x32xf32>
    %126 = arith.addf %124, %125 : vector<8x32xf32>
    %c0_54 = arith.constant 0 : index
    %c512 = arith.constant 512 : index
    %127 = vector.load %arg5[%c0_54, %c512] : memref<32x640xbf16, #tpu.memory_space<vmem>>, vector<32x128xbf16>
    %128 = arith.truncf %126 : vector<8x32xf32> to vector<8x32xbf16>
    %cst_55 = arith.constant dense<0.000000e+00> : vector<8x128xf32>
    %129 = tpu.matmul %128, %127, %cst_55 {dimension_numbers = #tpu.dot_dimension_numbers<[1], [0], [0], [1], [0, 0, 1, 1], [], []>} : vector<8x32xbf16>, vector<32x128xbf16>, vector<8x128xf32> -> vector<8x128xf32>
    %c11 = arith.constant 11 : index
    %c0_56 = arith.constant 0 : index
    %130 = vector.load %arg7[%c11, %c0_56] : memref<16x384xf32, #tpu.memory_space<vmem>>, vector<1x128xf32>
    %131 = vector.broadcast %130 : vector<1x128xf32> to vector<8x128xf32>
    %132 = arith.addf %129, %131 : vector<8x128xf32>
    %133 = arith.negf %132 : vector<8x128xf32>
    %134 = math.exp %133 : vector<8x128xf32>
    %cst_57 = arith.constant 1.000000e+00 : f32
    %135 = vector.broadcast %cst_57 : f32 to vector<8x128xf32>
    %136 = arith.addf %135, %134 : vector<8x128xf32>
    %137 = arith.divf %135, %136 : vector<8x128xf32>
    %c0_58 = arith.constant 0 : index
    %c0_59 = arith.constant 0 : index
    %138 = vector.load %arg8[%c0_58, %c0_59] : memref<8x128xf32, #tpu.memory_space<vmem>>, vector<8x128xf32>
    tpu.vector_store %arg8[%c0_58, %c0_59], %137 {strides = array<i32>} : memref<8x128xf32, #tpu.memory_space<vmem>>, vector<8x128xf32>,
    return
  }
}

</mosaic_0001>

<llo_original>
// kernel: tpu_custom_call.1
$region0: #{tpu_custom_call.1}
  #allocation0 [shape = 'u32[]', space=smem, size = 0x4, offset = 0x4, fixed_abs, tag = 'smem constant byte address 0x4 - core index']
  #allocation1 [shape = 'u32[144,128]{1,0:T(1,128)}', space=vmem, size = 0x12000, scoped, tag = 'internal scratch']
  %s0 = inlined_call_operand.vmem [shape: f32[8,92], index: 0, kind: input, shape index: {}]
  %s1 = inlined_call_operand.vmem [shape: bf16[92,1400], index: 1, kind: input, shape index: {}]
  %s2 = inlined_call_operand.vmem [shape: bf16[500,300], index: 2, kind: input, shape index: {}]
  %s3 = inlined_call_operand.vmem [shape: bf16[900,24], index: 3, kind: input, shape index: {}]
  %s4 = inlined_call_operand.vmem [shape: bf16[300,8], index: 4, kind: input, shape index: {}]
  %s5 = inlined_call_operand.vmem [shape: bf16[32,640], index: 5, kind: input, shape index: {}]
  %s6 = inlined_call_operand.vmem [shape: bf16[256,32], index: 6, kind: input, shape index: {}]
  %s7 = inlined_call_operand.vmem [shape: f32[16,384], index: 7, kind: input, shape index: {}]
  %s8 = inlined_call_operand.hbm [shape: f32[8,128], index: 8, kind: output, shape index: {}]
  %s9 = sld [smem:[#allocation0]]
  $region42: #{tpu_custom_call.1} parent=0
    _
  %s11 = ssub.s32 1, %s9
  %s12 = scalar_select 0, %s11, %s9
  $region1: #{tpu_custom_call.1} parent=0
    #allocation2 [shape = 'u8[4096]{0}', space=vmem, size = 0x1000, scoped, tag = 'output window, operand 0, single buffered']
    #allocation3 [shape = 's32[1]{0}', space=sflag, size = 0x4, scoped, tag = 'scoped memory for tpu_custom_call.1']
    %13 = vsyncpa [#allocation3], 0
    // Predicated region
    $region2: #{tpu_custom_call.1} parent=1 // pred_check
      _
    $region3: #{tpu_custom_call.1} parent=1 // pred_check_branch
      %15 = sbr.rel (0) target = $region5
    $region4: #{tpu_custom_call.1} parent=1 // pred_region
      _
    $region5: #{tpu_custom_call.1} parent=1 // pred_fallthru
      _
    // Predicated region
    $region6: #{tpu_custom_call.1} parent=1 // pred_check
      _
    $region7: #{tpu_custom_call.1} parent=1 // pred_check_branch
      %17 = sbr.rel (0) target = $region9
    $region8: #{tpu_custom_call.1} parent=1 // pred_region
      _
    $region9: #{tpu_custom_call.1} parent=1 // pred_fallthru
      _
    // Predicated region
    $region10: #{tpu_custom_call.1} parent=1 // pred_check
      _
    $region11: #{tpu_custom_call.1} parent=1 // pred_check_branch
      %19 = sbr.rel (0) target = $region13
    $region12: #{tpu_custom_call.1} parent=1 // pred_region
      _
    $region13: #{tpu_custom_call.1} parent=1 // pred_fallthru
      _
    // Predicated region
    $region14: #{tpu_custom_call.1} parent=1 // pred_check
      _
    $region15: #{tpu_custom_call.1} parent=1 // pred_check_branch
      %21 = sbr.rel (0) target = $region17
    $region16: #{tpu_custom_call.1} parent=1 // pred_region
      _
    $region17: #{tpu_custom_call.1} parent=1 // pred_fallthru
      _
    // Predicated region
    $region18: #{tpu_custom_call.1} parent=1 // pred_check
      _
    $region19: #{tpu_custom_call.1} parent=1 // pred_check_branch
      %23 = sbr.rel (0) target = $region21
    $region20: #{tpu_custom_call.1} parent=1 // pred_region
      _
    $region21: #{tpu_custom_call.1} parent=1 // pred_fallthru
      _
    // Predicated region
    $region22: #{tpu_custom_call.1} parent=1 // pred_check
      _
    $region23: #{tpu_custom_call.1} parent=1 // pred_check_branch
      %25 = sbr.rel (0) target = $region25
    $region24: #{tpu_custom_call.1} parent=1 // pred_region
      _
    $region25: #{tpu_custom_call.1} parent=1 // pred_fallthru
      _
    // Predicated region
    $region26: #{tpu_custom_call.1} parent=1 // pred_check
      _
    $region27: #{tpu_custom_call.1} parent=1 // pred_check_branch
      %27 = sbr.rel (0) target = $region29
    $region28: #{tpu_custom_call.1} parent=1 // pred_region
      _
    $region29: #{tpu_custom_call.1} parent=1 // pred_fallthru
      _
    // Predicated region
    $region30: #{tpu_custom_call.1} parent=1 // pred_check
      _
    $region31: #{tpu_custom_call.1} parent=1 // pred_check_branch
      %29 = sbr.rel (0) target = $region33
    $region32: #{tpu_custom_call.1} parent=1 // pred_region
      _
    $region33: #{tpu_custom_call.1} parent=1 // pred_fallthru
      _
    %v31 = vld [vmem:[%s0] sm:$0xff]
    %v32 = vld [vmem:[%s1] sm:$0xff]
    %v33 = vld [vmem:[%s1 + $0x8] sm:$0xff]
    %v34 = vld [vmem:[%s1 + $0x10] sm:$0xff]
    %v35 = vld [vmem:[%s1 + $0x18] sm:$0xff]
    %v36 = vld [vmem:[%s1 + $0x20] sm:$0xff]
    %v37 = vld [vmem:[%s1 + $0x28] sm:$0xf]
    %v38 = vld [vmem:[%s1 + $0x2c] sm:$0xff]
    %v39 = vld [vmem:[%s1 + $0x34] sm:$0xff]
    %v40 = vld [vmem:[%s1 + $0x3c] sm:$0xff]
    %v41 = vld [vmem:[%s1 + $0x44] sm:$0xff]
    %v42 = vld [vmem:[%s1 + $0x4c] sm:$0xff]
    %v43 = vld [vmem:[%s1 + $0x54] sm:$0xf]
    %v44 = vld [vmem:[%s1 + $0x58] sm:$0xff]
    %v45 = vld [vmem:[%s1 + $0x60] sm:$0xff]
    %v46 = vld [vmem:[%s1 + $0x68] sm:$0xff]
    %v47 = vld [vmem:[%s1 + $0x70] sm:$0xff]
    %v48 = vld [vmem:[%s1 + $0x78] sm:$0xff]
    %v49 = vld [vmem:[%s1 + $0x80] sm:$0xf]
    %v50 = vld [vmem:[%s1 + $0x84] sm:$0xff]
    %v51 = vld [vmem:[%s1 + $0x8c] sm:$0xff]
    %v52 = vld [vmem:[%s1 + $0x94] sm:$0xff]
    %v53 = vld [vmem:[%s1 + $0x9c] sm:$0xff]
    %v54 = vld [vmem:[%s1 + $0xa4] sm:$0xff]
    %v55 = vld [vmem:[%s1 + $0xac] sm:$0xf]
    %v56 = vld [vmem:[%s1 + $0xb0] sm:$0xff]
    %v57 = vld [vmem:[%s1 + $0xb8] sm:$0xff]
    %v58 = vld [vmem:[%s1 + $0xc0] sm:$0xff]
    %v59 = vld [vmem:[%s1 + $0xc8] sm:$0xff]
    %v60 = vld [vmem:[%s1 + $0xd0] sm:$0xff]
    %v61 = vld [vmem:[%s1 + $0xd8] sm:$0xf]
    %v62 = vld [vmem:[%s1 + $0xdc] sm:$0xff]
    %v63 = vld [vmem:[%s1 + $0xe4] sm:$0xff]
    %v64 = vld [vmem:[%s1 + $0xec] sm:$0xff]
    %v65 = vld [vmem:[%s1 + $0xf4] sm:$0xff]
    %v66 = vld [vmem:[%s1 + $0xfc] sm:$0xff]
    %v67 = vld [vmem:[%s1 + $0x104] sm:$0xf]
    %v68 = vld [vmem:[%s1 + $0x108] sm:$0xff]
    %v69 = vld [vmem:[%s1 + $0x110] sm:$0xff]
    %v70 = vld [vmem:[%s1 + $0x118] sm:$0xff]
    %v71 = vld [vmem:[%s1 + $0x120] sm:$0xff]
    %v72 = vld [vmem:[%s1 + $0x128] sm:$0xff]
    %v73 = vld [vmem:[%s1 + $0x130] sm:$0xf]
    %v74 = vld [vmem:[%s1 + $0x134] sm:$0xff]
    %v75 = vld [vmem:[%s1 + $0x13c] sm:$0xff]
    %v76 = vld [vmem:[%s1 + $0x144] sm:$0xff]
    %v77 = vld [vmem:[%s1 + $0x14c] sm:$0xff]
    %v78 = vld [vmem:[%s1 + $0x154] sm:$0xff]
    %v79 = vld [vmem:[%s1 + $0x15c] sm:$0xf]
    %v80 = vld [vmem:[%s1 + $0x160] sm:$0xff]
    %v81 = vld [vmem:[%s1 + $0x168] sm:$0xff]
    %v82 = vld [vmem:[%s1 + $0x170] sm:$0xff]
    %v83 = vld [vmem:[%s1 + $0x178] sm:$0xff]
    %v84 = vld [vmem:[%s1 + $0x180] sm:$0xff]
    %v85 = vld [vmem:[%s1 + $0x188] sm:$0xf]
    %v86 = vld [vmem:[%s1 + $0x18c] sm:$0xff]
    %v87 = vld [vmem:[%s1 + $0x194] sm:$0xff]
    %v88 = vld [vmem:[%s1 + $0x19c] sm:$0xff]
    %v89 = vld [vmem:[%s1 + $0x1a4] sm:$0xff]
    %v90 = vld [vmem:[%s1 + $0x1ac] sm:$0xff]
    %v91 = vld [vmem:[%s1 + $0x1b4] sm:$0xf]
    %v92 = vld [vmem:[%s1 + $0x1b8] sm:$0xff]
    %v93 = vld [vmem:[%s1 + $0x1c0] sm:$0xff]
    %v94 = vld [vmem:[%s1 + $0x1c8] sm:$0xff]
    %v95 = vld [vmem:[%s1 + $0x1d0] sm:$0xff]
    %v96 = vld [vmem:[%s1 + $0x1d8] sm:$0xff]
    %v97 = vld [vmem:[%s1 + $0x1e0] sm:$0xf]
    %v98 = vld [vmem:[%s1 + $0x1e4] sm:$0x33]
    %v99 = vld [vmem:[%s1 + $0x1ec] sm:$0x33]
    %v100 = vld [vmem:[%s1 + $0x1f4] sm:$0x33]
    %v101 = vld [vmem:[%s1 + $0x1fc] sm:$0x33]
    %v102 = vld [vmem:[%s1 + $0x204] sm:$0x33]
    %v103 = vld [vmem:[%s1 + $0x20c] sm:$0x3]
    %v104 = vpack.c.bf16 %v31, %v31
    %v177 = vunpack.c.l.b16 %v32
    %v178 = vunpack.c.h.b16 %v32
    %v179 = vunpack.c.l.b16 %v33
    %v180 = vunpack.c.h.b16 %v33
    %v181 = vunpack.c.l.b16 %v34
    %v182 = vunpack.c.h.b16 %v34
    %v183 = vunpack.c.l.b16 %v35
    %v184 = vunpack.c.h.b16 %v35
    %v185 = vunpack.c.l.b16 %v36
    %v186 = vunpack.c.h.b16 %v36
    %v187 = vunpack.c.l.b16 %v37
    %v188 = vunpack.c.l.b16 %v38
    %v189 = vunpack.c.h.b16 %v38
    %v190 = vunpack.c.l.b16 %v39
    %v191 = vunpack.c.h.b16 %v39
    %v192 = vunpack.c.l.b16 %v40
    %v193 = vunpack.c.h.b16 %v40
    %v194 = vunpack.c.l.b16 %v41
    %v195 = vunpack.c.h.b16 %v41
    %v196 = vunpack.c.l.b16 %v42
    %v197 = vunpack.c.h.b16 %v42
    %v198 = vunpack.c.l.b16 %v43
    %v199 = vunpack.c.l.b16 %v44
    %v200 = vunpack.c.h.b16 %v44
    %v201 = vunpack.c.l.b16 %v45
    %v202 = vunpack.c.h.b16 %v45
    %v203 = vunpack.c.l.b16 %v46
    %v204 = vunpack.c.h.b16 %v46
    %v205 = vunpack.c.l.b16 %v47
    %v206 = vunpack.c.h.b16 %v47
    %v207 = vunpack.c.l.b16 %v48
    %v208 = vunpack.c.h.b16 %v48
    %v209 = vunpack.c.l.b16 %v49
    %v210 = vunpack.c.l.b16 %v50
    %v211 = vunpack.c.h.b16 %v50
    %v212 = vunpack.c.l.b16 %v51
    %v213 = vunpack.c.h.b16 %v51
    %v214 = vunpack.c.l.b16 %v52
    %v215 = vunpack.c.h.b16 %v52
    %v216 = vunpack.c.l.b16 %v53
    %v217 = vunpack.c.h.b16 %v53
    %v218 = vunpack.c.l.b16 %v54
    %v219 = vunpack.c.h.b16 %v54
    %v220 = vunpack.c.l.b16 %v55
    %v221 = vunpack.c.l.b16 %v56
    %v222 = vunpack.c.h.b16 %v56
    %v223 = vunpack.c.l.b16 %v57
    %v224 = vunpack.c.h.b16 %v57
    %v225 = vunpack.c.l.b16 %v58
    %v226 = vunpack.c.h.b16 %v58
    %v227 = vunpack.c.l.b16 %v59
    %v228 = vunpack.c.h.b16 %v59
    %v229 = vunpack.c.l.b16 %v60
    %v230 = vunpack.c.h.b16 %v60
    %v231 = vunpack.c.l.b16 %v61
    %v232 = vunpack.c.l.b16 %v62
    %v233 = vunpack.c.h.b16 %v62
    %v234 = vunpack.c.l.b16 %v63
    %v235 = vunpack.c.h.b16 %v63
    %v236 = vunpack.c.l.b16 %v64
    %v237 = vunpack.c.h.b16 %v64
    %v238 = vunpack.c.l.b16 %v65
    %v239 = vunpack.c.h.b16 %v65
    %v240 = vunpack.c.l.b16 %v66
    %v241 = vunpack.c.h.b16 %v66
    %v242 = vunpack.c.l.b16 %v67
    %v243 = vunpack.c.l.b16 %v68
    %v244 = vunpack.c.h.b16 %v68
    %v245 = vunpack.c.l.b16 %v69
    %v246 = vunpack.c.h.b16 %v69
    %v247 = vunpack.c.l.b16 %v70
    %v248 = vunpack.c.h.b16 %v70
    %v249 = vunpack.c.l.b16 %v71
    %v250 = vunpack.c.h.b16 %v71
    %v251 = vunpack.c.l.b16 %v72
    %v252 = vunpack.c.h.b16 %v72
    %v253 = vunpack.c.l.b16 %v73
    %v254 = vunpack.c.l.b16 %v74
    %v255 = vunpack.c.h.b16 %v74
    %v256 = vunpack.c.l.b16 %v75
    %v257 = vunpack.c.h.b16 %v75
    %v258 = vunpack.c.l.b16 %v76
    %v259 = vunpack.c.h.b16 %v76
    %v260 = vunpack.c.l.b16 %v77
    %v261 = vunpack.c.h.b16 %v77
    %v262 = vunpack.c.l.b16 %v78
    %v263 = vunpack.c.h.b16 %v78
    %v264 = vunpack.c.l.b16 %v79
    %v265 = vunpack.c.l.b16 %v80
    %v266 = vunpack.c.h.b16 %v80
    %v267 = vunpack.c.l.b16 %v81
    %v268 = vunpack.c.h.b16 %v81
    %v269 = vunpack.c.l.b16 %v82
    %v270 = vunpack.c.h.b16 %v82
    %v271 = vunpack.c.l.b16 %v83
    %v272 = vunpack.c.h.b16 %v83
    %v273 = vunpack.c.l.b16 %v84
    %v274 = vunpack.c.h.b16 %v84
    %v275 = vunpack.c.l.b16 %v85
    %v276 = vunpack.c.l.b16 %v86
    %v277 = vunpack.c.h.b16 %v86
    %v278 = vunpack.c.l.b16 %v87
    %v279 = vunpack.c.h.b16 %v87
    %v280 = vunpack.c.l.b16 %v88
    %v281 = vunpack.c.h.b16 %v88
    %v282 = vunpack.c.l.b16 %v89
    %v283 = vunpack.c.h.b16 %v89
    %v284 = vunpack.c.l.b16 %v90
    %v285 = vunpack.c.h.b16 %v90
    %v286 = vunpack.c.l.b16 %v91
    %v287 = vunpack.c.l.b16 %v92
    %v288 = vunpack.c.h.b16 %v92
    %v289 = vunpack.c.l.b16 %v93
    %v290 = vunpack.c.h.b16 %v93
    %v291 = vunpack.c.l.b16 %v94
    %v292 = vunpack.c.h.b16 %v94
    %v293 = vunpack.c.l.b16 %v95
    %v294 = vunpack.c.h.b16 %v95
    %v295 = vunpack.c.l.b16 %v96
    %v296 = vunpack.c.h.b16 %v96
    %v297 = vunpack.c.l.b16 %v97
    %v298 = vunpack.c.l.b16 %v98
    %v299 = vunpack.c.h.b16 %v98
    %v300 = vunpack.c.l.b16 %v99
    %v301 = vunpack.c.h.b16 %v99
    %v302 = vunpack.c.l.b16 %v100
    %v303 = vunpack.c.h.b16 %v100
    %v304 = vunpack.c.l.b16 %v101
    %v305 = vunpack.c.h.b16 %v101
    %v306 = vunpack.c.l.b16 %v102
    %v307 = vunpack.c.h.b16 %v102
    %v308 = vunpack.c.l.b16 %v103
    %v309 = vpack.c.b16 %v188, %v177
    %v310 = vpack.c.b16 %v189, %v178
    %v311 = vpack.c.b16 %v190, %v179
    %v312 = vpack.c.b16 %v191, %v180
    %v313 = vpack.c.b16 %v192, %v181
    %v314 = vpack.c.b16 %v193, %v182
    %v315 = vpack.c.b16 %v194, %v183
    %v316 = vpack.c.b16 %v195, %v184
    %v317 = vpack.c.b16 %v196, %v185
    %v318 = vpack.c.b16 %v197, %v186
    %v319 = vpack.c.b16 %v198, %v187
    %v320 = vpack.c.b16 %v210, %v199
    %v321 = vpack.c.b16 %v211, %v200
    %v322 = vpack.c.b16 %v212, %v201
    %v323 = vpack.c.b16 %v213, %v202
    %v324 = vpack.c.b16 %v214, %v203
    %v325 = vpack.c.b16 %v215, %v204
    %v326 = vpack.c.b16 %v216, %v205
    %v327 = vpack.c.b16 %v217, %v206
    %v328 = vpack.c.b16 %v218, %v207
    %v329 = vpack.c.b16 %v219, %v208
    %v330 = vpack.c.b16 %v220, %v209
    %v331 = vpack.c.b16 %v232, %v221
    %v332 = vpack.c.b16 %v233, %v222
    %v333 = vpack.c.b16 %v234, %v223
    %v334 = vpack.c.b16 %v235, %v224
    %v335 = vpack.c.b16 %v236, %v225
    %v336 = vpack.c.b16 %v237, %v226
    %v337 = vpack.c.b16 %v238, %v227
    %v338 = vpack.c.b16 %v239, %v228
    %v339 = vpack.c.b16 %v240, %v229
    %v340 = vpack.c.b16 %v241, %v230
    %v341 = vpack.c.b16 %v242, %v231
    %v342 = vpack.c.b16 %v254, %v243
    %v343 = vpack.c.b16 %v255, %v244
    %v344 = vpack.c.b16 %v256, %v245
    %v345 = vpack.c.b16 %v257, %v246
    %v346 = vpack.c.b16 %v258, %v247
    %v347 = vpack.c.b16 %v259, %v248
    %v348 = vpack.c.b16 %v260, %v249
    %v349 = vpack.c.b16 %v261, %v250
    %v350 = vpack.c.b16 %v262, %v251
    %v351 = vpack.c.b16 %v263, %v252
    %v352 = vpack.c.b16 %v264, %v253
    %v353 = vpack.c.b16 %v276, %v265
    %v354 = vpack.c.b16 %v277, %v266
    %v355 = vpack.c.b16 %v278, %v267
    %v356 = vpack.c.b16 %v279, %v268
    %v357 = vpack.c.b16 %v280, %v269
    %v358 = vpack.c.b16 %v281, %v270
    %v359 = vpack.c.b16 %v282, %v271
    %v360 = vpack.c.b16 %v283, %v272
    %v361 = vpack.c.b16 %v284, %v273
    %v362 = vpack.c.b16 %v285, %v274
    %v363 = vpack.c.b16 %v286, %v275
    %v364 = vpack.c.b16 %v298, %v287
    %v365 = vpack.c.b16 %v299, %v288
    %v366 = vpack.c.b16 %v300, %v289
    %v367 = vpack.c.b16 %v301, %v290
    %v368 = vpack.c.b16 %v302, %v291
    %v369 = vpack.c.b16 %v303, %v292
    %v370 = vpack.c.b16 %v304, %v293
    %v371 = vpack.c.b16 %v305, %v294
    %v372 = vpack.c.b16 %v306, %v295
    %v373 = vpack.c.b16 %v307, %v296
    %v374 = vpack.c.b16 %v308, %v297
    %vm430 = vcmask 752640
    %v432 = vsel %vm430, %v104, 0
    %vm434 = vcmask 1045504
    %v436 = vsel %vm434, %v364, 0
    %v439 = vsel %vm434, %v365, 0
    %v442 = vsel %vm434, %v366, 0
    %v445 = vsel %vm434, %v367, 0
    %v448 = vsel %vm434, %v368, 0
    %v451 = vsel %vm434, %v369, 0
    %v454 = vsel %vm434, %v370, 0
    %v457 = vsel %vm434, %v371, 0
    %v460 = vsel %vm434, %v372, 0
    %v463 = vsel %vm434, %v373, 0
    %v466 = vsel %vm434, %v374, 0
    %468 = vmatprep.subr.bf16.mxu0 0
    %469 = vmatpush1.bf16.msra.mxu0 0
    %470 = vmatprep.subr.bf16.mxu0 0
    %471 = vmatpush1.bf16.msra.mxu0 0
    %472 = vmatprep.subr.bf16.mxu0 %v439
    %473 = vmatpush1.bf16.msra.mxu0 %v436
    %474 = vmatprep.subr.bf16.mxu0 %v354
    %475 = vmatpush1.bf16.msra.mxu0 %v353
    %476 = vmatprep.subr.bf16.mxu0 %v343
    %477 = vmatpush1.bf16.msra.mxu0 %v342
    %478 = vmatprep.subr.bf16.mxu0 %v332
    %479 = vmatpush1.bf16.msra.mxu0 %v331
    %480 = vmatprep.subr.bf16.mxu0 %v321
    %481 = vmatpush1.bf16.msra.mxu0 %v320
    %482 = vmatprep.subr.bf16.mxu0 %v310
    %483 = vmatpush1.bf16.msra.mxu0 %v309
    %484 = vmatprep.subr.bf16.mxu0 0
    %485 = vmatpush2.bf16.msra.mxu0 0
    %486 = vmatprep.subr.bf16.mxu0 0
    %487 = vmatpush2.bf16.msra.mxu0 0
    %488 = vmatprep.subr.bf16.mxu0 0
    %489 = vmatpush2.bf16.msra.mxu0 0
    %490 = vmatprep.subr.bf16.mxu0 0
    %491 = vmatpush2.bf16.msra.mxu0 0
    %492 = vmatprep.subr.bf16.mxu0 0
    %493 = vmatpush2.bf16.msra.mxu0 0
    %494 = vmatprep.subr.bf16.mxu0 0
    %495 = vmatpush2.bf16.msra.mxu0 0
    %496 = vmatprep.subr.bf16.mxu0 0
    %497 = vmatpush2.bf16.msra.mxu0 0
    %498 = vmatprep.subr.bf16.mxu0 0
    %499 = vmatpush2.bf16.msra.mxu0 0
    %500 = vmatprep.mubr.bf16.mxu0 0
    %501 = vmatmul.mubr.bf16.gmra.mxu0 %v432
    %v502 = vpop.f32.mrf.mxu0
    %v503 = vadd.f32 0.0, %v502
    %v504 = vpop.f32.mrf.mxu0
    %v505 = vadd.f32 0.0, %v504
    %v506 = vpop.f32.mrf.mxu0
    %v507 = vpop.f32.mrf.mxu0
    %508 = vdwg.mxu0
    %509 = vmatprep.subr.bf16.mxu0 0
    %510 = vmatpush1.bf16.msra.mxu0 0
    %511 = vmatprep.subr.bf16.mxu0 0
    %512 = vmatpush1.bf16.msra.mxu0 0
    %513 = vmatprep.subr.bf16.mxu0 %v445
    %514 = vmatpush1.bf16.msra.mxu0 %v442
    %515 = vmatprep.subr.bf16.mxu0 %v356
    %516 = vmatpush1.bf16.msra.mxu0 %v355
    %517 = vmatprep.subr.bf16.mxu0 %v345
    %518 = vmatpush1.bf16.msra.mxu0 %v344
    %519 = vmatprep.subr.bf16.mxu0 %v334
    %520 = vmatpush1.bf16.msra.mxu0 %v333
    %521 = vmatprep.subr.bf16.mxu0 %v323
    %522 = vmatpush1.bf16.msra.mxu0 %v322
    %523 = vmatprep.subr.bf16.mxu0 %v312
    %524 = vmatpush1.bf16.msra.mxu0 %v311
    %525 = vmatprep.subr.bf16.mxu0 0
    %526 = vmatpush2.bf16.msra.mxu0 0
    %527 = vmatprep.subr.bf16.mxu0 0
    %528 = vmatpush2.bf16.msra.mxu0 0
    %529 = vmatprep.subr.bf16.mxu0 0
    %530 = vmatpush2.bf16.msra.mxu0 0
    %531 = vmatprep.subr.bf16.mxu0 0
    %532 = vmatpush2.bf16.msra.mxu0 0
    %533 = vmatprep.subr.bf16.mxu0 0
    %534 = vmatpush2.bf16.msra.mxu0 0
    %535 = vmatprep.subr.bf16.mxu0 0
    %536 = vmatpush2.bf16.msra.mxu0 0
    %537 = vmatprep.subr.bf16.mxu0 0
    %538 = vmatpush2.bf16.msra.mxu0 0
    %539 = vmatprep.subr.bf16.mxu0 0
    %540 = vmatpush2.bf16.msra.mxu0 0
    %541 = vmatprep.mubr.bf16.mxu0 0
    %542 = vmatmul.mubr.bf16.gmra.mxu0 %v432
    %v543 = vpop.f32.mrf.mxu0
    %v544 = vadd.f32 0.0, %v543
    %v545 = vpop.f32.mrf.mxu0
    %v546 = vadd.f32 0.0, %v545
    %v547 = vpop.f32.mrf.mxu0
    %v548 = vpop.f32.mrf.mxu0
    %549 = vdwg.mxu0
    %550 = vmatprep.subr.bf16.mxu0 0
    %551 = vmatpush1.bf16.msra.mxu0 0
    %552 = vmatprep.subr.bf16.mxu0 0
    %553 = vmatpush1.bf16.msra.mxu0 0
    %554 = vmatprep.subr.bf16.mxu0 %v451
    %555 = vmatpush1.bf16.msra.mxu0 %v448
    %556 = vmatprep.subr.bf16.mxu0 %v358
    %557 = vmatpush1.bf16.msra.mxu0 %v357
    %558 = vmatprep.subr.bf16.mxu0 %v347
    %559 = vmatpush1.bf16.msra.mxu0 %v346
    %560 = vmatprep.subr.bf16.mxu0 %v336
    %561 = vmatpush1.bf16.msra.mxu0 %v335
    %562 = vmatprep.subr.bf16.mxu0 %v325
    %563 = vmatpush1.bf16.msra.mxu0 %v324
    %564 = vmatprep.subr.bf16.mxu0 %v314
    %565 = vmatpush1.bf16.msra.mxu0 %v313
    %566 = vmatprep.subr.bf16.mxu0 0
    %567 = vmatpush2.bf16.msra.mxu0 0
    %568 = vmatprep.subr.bf16.mxu0 0
    %569 = vmatpush2.bf16.msra.mxu0 0
    %570 = vmatprep.subr.bf16.mxu0 0
    %571 = vmatpush2.bf16.msra.mxu0 0
    %572 = vmatprep.subr.bf16.mxu0 0
    %573 = vmatpush2.bf16.msra.mxu0 0
    %574 = vmatprep.subr.bf16.mxu0 0
    %575 = vmatpush2.bf16.msra.mxu0 0
    %576 = vmatprep.subr.bf16.mxu0 0
    %577 = vmatpush2.bf16.msra.mxu0 0
    %578 = vmatprep.subr.bf16.mxu0 0
    %579 = vmatpush2.bf16.msra.mxu0 0
    %580 = vmatprep.subr.bf16.mxu0 0
    %581 = vmatpush2.bf16.msra.mxu0 0
    %582 = vmatprep.mubr.bf16.mxu0 0
    %583 = vmatmul.mubr.bf16.gmra.mxu0 %v432
    %v584 = vpop.f32.mrf.mxu0
    %v585 = vadd.f32 0.0, %v584
    %v586 = vpop.f32.mrf.mxu0
    %v587 = vadd.f32 0.0, %v586
    %v588 = vpop.f32.mrf.mxu0
    %v589 = vpop.f32.mrf.mxu0
    %590 = vdwg.mxu0
    %591 = vmatprep.subr.bf16.mxu0 0
    %592 = vmatpush1.bf16.msra.mxu0 0
    %593 = vmatprep.subr.bf16.mxu0 0
    %594 = vmatpush1.bf16.msra.mxu0 0
    %595 = vmatprep.subr.bf16.mxu0 %v457
    %596 = vmatpush1.bf16.msra.mxu0 %v454
    %597 = vmatprep.subr.bf16.mxu0 %v360
    %598 = vmatpush1.bf16.msra.mxu0 %v359
    %599 = vmatprep.subr.bf16.mxu0 %v349
    %600 = vmatpush1.bf16.msra.mxu0 %v348
    %601 = vmatprep.subr.bf16.mxu0 %v338
    %602 = vmatpush1.bf16.msra.mxu0 %v337
    %603 = vmatprep.subr.bf16.mxu0 %v327
    %604 = vmatpush1.bf16.msra.mxu0 %v326
    %605 = vmatprep.subr.bf16.mxu0 %v316
    %606 = vmatpush1.bf16.msra.mxu0 %v315
    %607 = vmatprep.subr.bf16.mxu0 0
    %608 = vmatpush2.bf16.msra.mxu0 0
    %609 = vmatprep.subr.bf16.mxu0 0
    %610 = vmatpush2.bf16.msra.mxu0 0
    %611 = vmatprep.subr.bf16.mxu0 0
    %612 = vmatpush2.bf16.msra.mxu0 0
    %613 = vmatprep.subr.bf16.mxu0 0
    %614 = vmatpush2.bf16.msra.mxu0 0
    %615 = vmatprep.subr.bf16.mxu0 0
    %616 = vmatpush2.bf16.msra.mxu0 0
    %617 = vmatprep.subr.bf16.mxu0 0
    %618 = vmatpush2.bf16.msra.mxu0 0
    %619 = vmatprep.subr.bf16.mxu0 0
    %620 = vmatpush2.bf16.msra.mxu0 0
    %621 = vmatprep.subr.bf16.mxu0 0
    %622 = vmatpush2.bf16.msra.mxu0 0
    %623 = vmatprep.mubr.bf16.mxu0 0
    %624 = vmatmul.mubr.bf16.gmra.mxu0 %v432
    %v625 = vpop.f32.mrf.mxu0
    %v626 = vadd.f32 0.0, %v625
    %v627 = vpop.f32.mrf.mxu0
    %v628 = vadd.f32 0.0, %v627
    %v629 = vpop.f32.mrf.mxu0
    %v630 = vpop.f32.mrf.mxu0
    %631 = vdwg.mxu0
    %632 = vmatprep.subr.bf16.mxu0 0
    %633 = vmatpush1.bf16.msra.mxu0 0
    %634 = vmatprep.subr.bf16.mxu0 0
    %635 = vmatpush1.bf16.msra.mxu0 0
    %636 = vmatprep.subr.bf16.mxu0 %v463
    %637 = vmatpush1.bf16.msra.mxu0 %v460
    %638 = vmatprep.subr.bf16.mxu0 %v362
    %639 = vmatpush1.bf16.msra.mxu0 %v361
    %640 = vmatprep.subr.bf16.mxu0 %v351
    %641 = vmatpush1.bf16.msra.mxu0 %v350
    %642 = vmatprep.subr.bf16.mxu0 %v340
    %643 = vmatpush1.bf16.msra.mxu0 %v339
    %644 = vmatprep.subr.bf16.mxu0 %v329
    %645 = vmatpush1.bf16.msra.mxu0 %v328
    %646 = vmatprep.subr.bf16.mxu0 %v318
    %647 = vmatpush1.bf16.msra.mxu0 %v317
    %648 = vmatprep.subr.bf16.mxu0 0
    %649 = vmatpush2.bf16.msra.mxu0 0
    %650 = vmatprep.subr.bf16.mxu0 0
    %651 = vmatpush2.bf16.msra.mxu0 0
    %652 = vmatprep.subr.bf16.mxu0 0
    %653 = vmatpush2.bf16.msra.mxu0 0
    %654 = vmatprep.subr.bf16.mxu0 0
    %655 = vmatpush2.bf16.msra.mxu0 0
    %656 = vmatprep.subr.bf16.mxu0 0
    %657 = vmatpush2.bf16.msra.mxu0 0
    %658 = vmatprep.subr.bf16.mxu0 0
    %659 = vmatpush2.bf16.msra.mxu0 0
    %660 = vmatprep.subr.bf16.mxu0 0
    %661 = vmatpush2.bf16.msra.mxu0 0
    %662 = vmatprep.subr.bf16.mxu0 0
    %663 = vmatpush2.bf16.msra.mxu0 0
    %664 = vmatprep.mubr.bf16.mxu0 0
    %665 = vmatmul.mubr.bf16.gmra.mxu0 %v432
    %v666 = vpop.f32.mrf.mxu0
    %v667 = vadd.f32 0.0, %v666
    %v668 = vpop.f32.mrf.mxu0
    %v669 = vadd.f32 0.0, %v668
    %v670 = vpop.f32.mrf.mxu0
    %v671 = vpop.f32.mrf.mxu0
    %672 = vdwg.mxu0
    %673 = vmatprep.subr.bf16.mxu0 0
    %674 = vmatpush1.bf16.msra.mxu0 0
    %675 = vmatprep.subr.bf16.mxu0 0
    %676 = vmatpush1.bf16.msra.mxu0 0
    %677 = vmatprep.subr.bf16.mxu0 0
    %678 = vmatpush1.bf16.msra.mxu0 %v466
    %679 = vmatprep.subr.bf16.mxu0 0
    %680 = vmatpush1.bf16.msra.mxu0 %v363
    %681 = vmatprep.subr.bf16.mxu0 0
    %682 = vmatpush1.bf16.msra.mxu0 %v352
    %683 = vmatprep.subr.bf16.mxu0 0
    %684 = vmatpush1.bf16.msra.mxu0 %v341
    %685 = vmatprep.subr.bf16.mxu0 0
    %686 = vmatpush1.bf16.msra.mxu0 %v330
    %687 = vmatprep.subr.bf16.mxu0 0
    %688 = vmatpush1.bf16.msra.mxu0 %v319
    %689 = vmatprep.subr.bf16.mxu0 0
    %690 = vmatpush2.bf16.msra.mxu0 0
    %691 = vmatprep.subr.bf16.mxu0 0
    %692 = vmatpush2.bf16.msra.mxu0 0
    %693 = vmatprep.subr.bf16.mxu0 0
    %694 = vmatpush2.bf16.msra.mxu0 0
    %695 = vmatprep.subr.bf16.mxu0 0
    %696 = vmatpush2.bf16.msra.mxu0 0
    %697 = vmatprep.subr.bf16.mxu0 0
    %698 = vmatpush2.bf16.msra.mxu0 0
    %699 = vmatprep.subr.bf16.mxu0 0
    %700 = vmatpush2.bf16.msra.mxu0 0
    %701 = vmatprep.subr.bf16.mxu0 0
    %702 = vmatpush2.bf16.msra.mxu0 0
    %703 = vmatprep.subr.bf16.mxu0 0
    %704 = vmatpush2.bf16.msra.mxu0 0
    %705 = vmatprep.mubr.bf16.mxu0 0
    %706 = vmatmul.mubr.bf16.gmra.mxu0 %v432
    %v707 = vpop.f32.mrf.mxu0
    %v708 = vadd.f32 0.0, %v707
    %v709 = vpop.f32.mrf.mxu0
    %v710 = vpop.f32.mrf.mxu0
    %v711 = vpop.f32.mrf.mxu0
    %712 = vdwg.mxu0
    %v713 = vmax.f32 %v503, 0.0
    %v714 = vmax.f32 %v505, 0.0
    %v715 = vmax.f32 %v544, 0.0
    %v716 = vmax.f32 %v546, 0.0
    %v717 = vmax.f32 %v585, 0.0
    %v718 = vmax.f32 %v587, 0.0
    %v719 = vmax.f32 %v626, 0.0
    %v720 = vmax.f32 %v628, 0.0
    %v721 = vmax.f32 %v667, 0.0
    %v722 = vmax.f32 %v669, 0.0
    %v723 = vmax.f32 %v708, 0.0
    %v724 = vld [vmem:[%s2] sm:$0xff]
    %v725 = vld [vmem:[%s2 + $0x8] sm:$0xf]
    %v726 = vld [vmem:[%s2 + $0xc] sm:$0xff]
    %v727 = vld [vmem:[%s2 + $0x14] sm:$0xf]
    %v728 = vld [vmem:[%s2 + $0x18] sm:$0xff]
    %v729 = vld [vmem:[%s2 + $0x20] sm:$0xf]
    %v730 = vld [vmem:[%s2 + $0x24] sm:$0xff]
    %v731 = vld [vmem:[%s2 + $0x2c] sm:$0xf]
    %v732 = vld [vmem:[%s2 + $0x30] sm:$0xff]
    %v733 = vld [vmem:[%s2 + $0x38] sm:$0xf]
    %v734 = vld [vmem:[%s2 + $0x3c] sm:$0xff]
    %v735 = vld [vmem:[%s2 + $0x44] sm:$0xf]
    %v736 = vld [vmem:[%s2 + $0x48] sm:$0xff]
    %v737 = vld [vmem:[%s2 + $0x50] sm:$0xf]
    %v738 = vld [vmem:[%s2 + $0x54] sm:$0xff]
    %v739 = vld [vmem:[%s2 + $0x5c] sm:$0xf]
    %v740 = vld [vmem:[%s2 + $0x60] sm:$0xff]
    %v741 = vld [vmem:[%s2 + $0x68] sm:$0xf]
    %v742 = vld [vmem:[%s2 + $0x6c] sm:$0xff]
    %v743 = vld [vmem:[%s2 + $0x74] sm:$0xf]
    %v744 = vld [vmem:[%s2 + $0x78] sm:$0xff]
    %v745 = vld [vmem:[%s2 + $0x80] sm:$0xf]
    %v746 = vld [vmem:[%s2 + $0x84] sm:$0xff]
    %v747 = vld [vmem:[%s2 + $0x8c] sm:$0xf]
    %v748 = vld [vmem:[%s2 + $0x90] sm:$0xff]
    %v749 = vld [vmem:[%s2 + $0x98] sm:$0xf]
    %v750 = vld [vmem:[%s2 + $0x9c] sm:$0xff]
    %v751 = vld [vmem:[%s2 + $0xa4] sm:$0xf]
    %v752 = vld [vmem:[%s2 + $0xa8] sm:$0xff]
    %v753 = vld [vmem:[%s2 + $0xb0] sm:$0xf]
    %v754 = vld [vmem:[%s2 + $0xb4] sm:$0xff]
    %v755 = vld [vmem:[%s2 + $0xbc] sm:$0xf]
    %v756 = vld [vmem:[%s2 + $0xc0] sm:$0xff]
    %v757 = vld [vmem:[%s2 + $0xc8] sm:$0xf]
    %v758 = vld [vmem:[%s2 + $0xcc] sm:$0xff]
    %v759 = vld [vmem:[%s2 + $0xd4] sm:$0xf]
    %v760 = vld [vmem:[%s2 + $0xd8] sm:$0xff]
    %v761 = vld [vmem:[%s2 + $0xe0] sm:$0xf]
    %v762 = vld [vmem:[%s2 + $0xe4] sm:$0xff]
    %v763 = vld [vmem:[%s2 + $0xec] sm:$0xf]
    %v764 = vld [vmem:[%s2 + $0xf0] sm:$0xff]
    %v765 = vld [vmem:[%s2 + $0xf8] sm:$0xf]
    %v766 = vld [vmem:[%s2 + $0xfc] sm:$0xff]
    %v767 = vld [vmem:[%s2 + $0x104] sm:$0xf]
    %v768 = vld [vmem:[%s2 + $0x108] sm:$0xff]
    %v769 = vld [vmem:[%s2 + $0x110] sm:$0xf]
    %v770 = vld [vmem:[%s2 + $0x114] sm:$0xff]
    %v771 = vld [vmem:[%s2 + $0x11c] sm:$0xf]
    %v772 = vld [vmem:[%s2 + $0x120] sm:$0xff]
    %v773 = vld [vmem:[%s2 + $0x128] sm:$0xf]
    %v774 = vld [vmem:[%s2 + $0x12c] sm:$0xff]
    %v775 = vld [vmem:[%s2 + $0x134] sm:$0xf]
    %v776 = vld [vmem:[%s2 + $0x138] sm:$0xff]
    %v777 = vld [vmem:[%s2 + $0x140] sm:$0xf]
    %v778 = vld [vmem:[%s2 + $0x144] sm:$0xff]
    %v779 = vld [vmem:[%s2 + $0x14c] sm:$0xf]
    %v780 = vld [vmem:[%s2 + $0x150] sm:$0xff]
    %v781 = vld [vmem:[%s2 + $0x158] sm:$0xf]
    %v782 = vld [vmem:[%s2 + $0x15c] sm:$0xff]
    %v783 = vld [vmem:[%s2 + $0x164] sm:$0xf]
    %v784 = vld [vmem:[%s2 + $0x168] sm:$0xff]
    %v785 = vld [vmem:[%s2 + $0x170] sm:$0xf]
    %v786 = vld [vmem:[%s2 + $0x174] sm:$0xff]
    %v787 = vld [vmem:[%s2 + $0x17c] sm:$0xf]
    %v788 = vld [vmem:[%s2 + $0x180] sm:$0xff]
    %v789 = vld [vmem:[%s2 + $0x188] sm:$0xf]
    %v790 = vld [vmem:[%s2 + $0x18c] sm:$0xff]
    %v791 = vld [vmem:[%s2 + $0x194] sm:$0xf]
    %v792 = vld [vmem:[%s2 + $0x198] sm:$0xff]
    %v793 = vld [vmem:[%s2 + $0x1a0] sm:$0xf]
    %v794 = vld [vmem:[%s2 + $0x1a4] sm:$0xff]
    %v795 = vld [vmem:[%s2 + $0x1ac] sm:$0xf]
    %v796 = vld [vmem:[%s2 + $0x1b0] sm:$0xff]
    %v797 = vld [vmem:[%s2 + $0x1b8] sm:$0xf]
    %v798 = vld [vmem:[%s2 + $0x1bc] sm:$0xff]
    %v799 = vld [vmem:[%s2 + $0x1c4] sm:$0xf]
    %v800 = vld [vmem:[%s2 + $0x1c8] sm:$0xff]
    %v801 = vld [vmem:[%s2 + $0x1d0] sm:$0xf]
    %v802 = vld [vmem:[%s2 + $0x1d4] sm:$0xff]
    %v803 = vld [vmem:[%s2 + $0x1dc] sm:$0xf]
    %v804 = vld [vmem:[%s2 + $0x1e0] sm:$0xff]
    %v805 = vld [vmem:[%s2 + $0x1e8] sm:$0xf]
    %v806 = vld [vmem:[%s2 + $0x1ec] sm:$0xff]
    %v807 = vld [vmem:[%s2 + $0x1f4] sm:$0xf]
    %v808 = vld [vmem:[%s2 + $0x1f8] sm:$0xff]
    %v809 = vld [vmem:[%s2 + $0x200] sm:$0xf]
    %v810 = vld [vmem:[%s2 + $0x204] sm:$0xff]
    %v811 = vld [vmem:[%s2 + $0x20c] sm:$0xf]
    %v812 = vld [vmem:[%s2 + $0x210] sm:$0xff]
    %v813 = vld [vmem:[%s2 + $0x218] sm:$0xf]
    %v814 = vld [vmem:[%s2 + $0x21c] sm:$0xff]
    %v815 = vld [vmem:[%s2 + $0x224] sm:$0xf]
    %v816 = vld [vmem:[%s2 + $0x228] sm:$0xff]
    %v817 = vld [vmem:[%s2 + $0x230] sm:$0xf]
    %v818 = vld [vmem:[%s2 + $0x234] sm:$0xff]
    %v819 = vld [vmem:[%s2 + $0x23c] sm:$0xf]
    %v820 = vld [vmem:[%s2 + $0x240] sm:$0xff]
    %v821 = vld [vmem:[%s2 + $0x248] sm:$0xf]
    %v822 = vld [vmem:[%s2 + $0x24c] sm:$0xff]
    %v823 = vld [vmem:[%s2 + $0x254] sm:$0xf]
    %v824 = vld [vmem:[%s2 + $0x258] sm:$0xff]
    %v825 = vld [vmem:[%s2 + $0x260] sm:$0xf]
    %v826 = vld [vmem:[%s2 + $0x264] sm:$0xff]
    %v827 = vld [vmem:[%s2 + $0x26c] sm:$0xf]
    %v828 = vld [vmem:[%s2 + $0x270] sm:$0xff]
    %v829 = vld [vmem:[%s2 + $0x278] sm:$0xf]
    %v830 = vld [vmem:[%s2 + $0x27c] sm:$0xff]
    %v831 = vld [vmem:[%s2 + $0x284] sm:$0xf]
    %v832 = vld [vmem:[%s2 + $0x288] sm:$0xff]
    %v833 = vld [vmem:[%s2 + $0x290] sm:$0xf]
    %v834 = vld [vmem:[%s2 + $0x294] sm:$0xff]
    %v835 = vld [vmem:[%s2 + $0x29c] sm:$0xf]
    %v836 = vld [vmem:[%s2 + $0x2a0] sm:$0xff]
    %v837 = vld [vmem:[%s2 + $0x2a8] sm:$0xf]
    %v838 = vld [vmem:[%s2 + $0x2ac] sm:$0xff]
    %v839 = vld [vmem:[%s2 + $0x2b4] sm:$0xf]
    %v840 = vld [vmem:[%s2 + $0x2b8] sm:$0xff]
    %v841 = vld [vmem:[%s2 + $0x2c0] sm:$0xf]
    %v842 = vld [vmem:[%s2 + $0x2c4] sm:$0xff]
    %v843 = vld [vmem:[%s2 + $0x2cc] sm:$0xf]
    %v844 = vld [vmem:[%s2 + $0x2d0] sm:$0xff]
    %v845 = vld [vmem:[%s2 + $0x2d8] sm:$0xf]
    %v846 = vld [vmem:[%s2 + $0x2dc] sm:$0xff]
    %v847 = vld [vmem:[%s2 + $0x2e4] sm:$0xf]
    %v848 = vld [vmem:[%s2 + $0x2e8] sm:$0x33]
    %v849 = vld [vmem:[%s2 + $0x2f0] sm:$0x3]
    %v850 = vpack.c.bf16 %v713, %v713
    %v851 = vpack.c.bf16 %v714, %v714
    %v852 = vpack.c.bf16 %v715, %v715
    %v853 = vpack.c.bf16 %v716, %v716
    %v854 = vld [vmem:[%s7] ss:$8 sm:$0x7]
    %v856 = vlaneseq
    %v857 = vshrl.u32 %v856, 7
    %v858 = vsub.s32 0, %v857
    %v859 = vrot.slane %v854, %v858
    %v860 = vlaneseq
    %v861 = vshrl.u32 %v860, 7
    %v862 = vsub.s32 1, %v861
    %v863 = vrot.slane %v854, %v862
    %v864 = vlaneseq
    %v865 = vshrl.u32 %v864, 7
    %v866 = vsub.s32 2, %v865
    %v867 = vrot.slane %v854, %v866
    %v997 = vunpack.c.l.b16 %v724
    %v998 = vunpack.c.h.b16 %v724
    %v999 = vunpack.c.l.b16 %v725
    %v1000 = vunpack.c.l.b16 %v726
    %v1001 = vunpack.c.h.b16 %v726
    %v1002 = vunpack.c.l.b16 %v727
    %v1003 = vunpack.c.l.b16 %v728
    %v1004 = vunpack.c.h.b16 %v728
    %v1005 = vunpack.c.l.b16 %v729
    %v1006 = vunpack.c.l.b16 %v730
    %v1007 = vunpack.c.h.b16 %v730
    %v1008 = vunpack.c.l.b16 %v731
    %v1009 = vunpack.c.l.b16 %v732
    %v1010 = vunpack.c.h.b16 %v732
    %v1011 = vunpack.c.l.b16 %v733
    %v1012 = vunpack.c.l.b16 %v734
    %v1013 = vunpack.c.h.b16 %v734
    %v1014 = vunpack.c.l.b16 %v735
    %v1015 = vunpack.c.l.b16 %v736
    %v1016 = vunpack.c.h.b16 %v736
    %v1017 = vunpack.c.l.b16 %v737
    %v1018 = vunpack.c.l.b16 %v738
    %v1019 = vunpack.c.h.b16 %v738
    %v1020 = vunpack.c.l.b16 %v739
    %v1021 = vunpack.c.l.b16 %v740
    %v1022 = vunpack.c.h.b16 %v740
    %v1023 = vunpack.c.l.b16 %v741
    %v1024 = vunpack.c.l.b16 %v742
    %v1025 = vunpack.c.h.b16 %v742
    %v1026 = vunpack.c.l.b16 %v743
    %v1027 = vunpack.c.l.b16 %v744
    %v1028 = vunpack.c.h.b16 %v744
    %v1029 = vunpack.c.l.b16 %v745
    %v1030 = vunpack.c.l.b16 %v746
    %v1031 = vunpack.c.h.b16 %v746
    %v1032 = vunpack.c.l.b16 %v747
    %v1033 = vunpack.c.l.b16 %v748
    %v1034 = vunpack.c.h.b16 %v748
    %v1035 = vunpack.c.l.b16 %v749
    %v1036 = vunpack.c.l.b16 %v750
    %v1037 = vunpack.c.h.b16 %v750
    %v1038 = vunpack.c.l.b16 %v751
    %v1039 = vunpack.c.l.b16 %v752
    %v1040 = vunpack.c.h.b16 %v752
    %v1041 = vunpack.c.l.b16 %v753
    %v1042 = vunpack.c.l.b16 %v754
    %v1043 = vunpack.c.h.b16 %v754
    %v1044 = vunpack.c.l.b16 %v755
    %v1045 = vunpack.c.l.b16 %v756
    %v1046 = vunpack.c.h.b16 %v756
    %v1047 = vunpack.c.l.b16 %v757
    %v1048 = vunpack.c.l.b16 %v758
    %v1049 = vunpack.c.h.b16 %v758
    %v1050 = vunpack.c.l.b16 %v759
    %v1051 = vunpack.c.l.b16 %v760
    %v1052 = vunpack.c.h.b16 %v760
    %v1053 = vunpack.c.l.b16 %v761
    %v1054 = vunpack.c.l.b16 %v762
    %v1055 = vunpack.c.h.b16 %v762
    %v1056 = vunpack.c.l.b16 %v763
    %v1057 = vunpack.c.l.b16 %v764
    %v1058 = vunpack.c.h.b16 %v764
    %v1059 = vunpack.c.l.b16 %v765
    %v1060 = vunpack.c.l.b16 %v766
    %v1061 = vunpack.c.h.b16 %v766
    %v1062 = vunpack.c.l.b16 %v767
    %v1063 = vunpack.c.l.b16 %v768
    %v1064 = vunpack.c.h.b16 %v768
    %v1065 = vunpack.c.l.b16 %v769
    %v1066 = vunpack.c.l.b16 %v770
    %v1067 = vunpack.c.h.b16 %v770
    %v1068 = vunpack.c.l.b16 %v771
    %v1069 = vunpack.c.l.b16 %v772
    %v1070 = vunpack.c.h.b16 %v772
    %v1071 = vunpack.c.l.b16 %v773
    %v1072 = vunpack.c.l.b16 %v774
    %v1073 = vunpack.c.h.b16 %v774
    %v1074 = vunpack.c.l.b16 %v775
    %v1075 = vunpack.c.l.b16 %v776
    %v1076 = vunpack.c.h.b16 %v776
    %v1077 = vunpack.c.l.b16 %v777
    %v1078 = vunpack.c.l.b16 %v778
    %v1079 = vunpack.c.h.b16 %v778
    %v1080 = vunpack.c.l.b16 %v779
    %v1081 = vunpack.c.l.b16 %v780
    %v1082 = vunpack.c.h.b16 %v780
    %v1083 = vunpack.c.l.b16 %v781
    %v1084 = vunpack.c.l.b16 %v782
    %v1085 = vunpack.c.h.b16 %v782
    %v1086 = vunpack.c.l.b16 %v783
    %v1087 = vunpack.c.l.b16 %v784
    %v1088 = vunpack.c.h.b16 %v784
    %v1089 = vunpack.c.l.b16 %v785
    %v1090 = vunpack.c.l.b16 %v786
    %v1091 = vunpack.c.h.b16 %v786
    %v1092 = vunpack.c.l.b16 %v787
    %v1093 = vunpack.c.l.b16 %v788
    %v1094 = vunpack.c.h.b16 %v788
    %v1095 = vunpack.c.l.b16 %v789
    %v1096 = vunpack.c.l.b16 %v790
    %v1097 = vunpack.c.h.b16 %v790
    %v1098 = vunpack.c.l.b16 %v791
    %v1099 = vunpack.c.l.b16 %v792
    %v1100 = vunpack.c.h.b16 %v792
    %v1101 = vunpack.c.l.b16 %v793
    %v1102 = vunpack.c.l.b16 %v794
    %v1103 = vunpack.c.h.b16 %v794
    %v1104 = vunpack.c.l.b16 %v795
    %v1105 = vunpack.c.l.b16 %v796
    %v1106 = vunpack.c.h.b16 %v796
    %v1107 = vunpack.c.l.b16 %v797
    %v1108 = vunpack.c.l.b16 %v798
    %v1109 = vunpack.c.h.b16 %v798
    %v1110 = vunpack.c.l.b16 %v799
    %v1111 = vunpack.c.l.b16 %v800
    %v1112 = vunpack.c.h.b16 %v800
    %v1113 = vunpack.c.l.b16 %v801
    %v1114 = vunpack.c.l.b16 %v802
    %v1115 = vunpack.c.h.b16 %v802
    %v1116 = vunpack.c.l.b16 %v803
    %v1117 = vunpack.c.l.b16 %v804
    %v1118 = vunpack.c.h.b16 %v804
    %v1119 = vunpack.c.l.b16 %v805
    %v1120 = vunpack.c.l.b16 %v806
    %v1121 = vunpack.c.h.b16 %v806
    %v1122 = vunpack.c.l.b16 %v807
    %v1123 = vunpack.c.l.b16 %v808
    %v1124 = vunpack.c.h.b16 %v808
    %v1125 = vunpack.c.l.b16 %v809
    %v1126 = vunpack.c.l.b16 %v810
    %v1127 = vunpack.c.h.b16 %v810
    %v1128 = vunpack.c.l.b16 %v811
    %v1129 = vunpack.c.l.b16 %v812
    %v1130 = vunpack.c.h.b16 %v812
    %v1131 = vunpack.c.l.b16 %v813
    %v1132 = vunpack.c.l.b16 %v814
    %v1133 = vunpack.c.h.b16 %v814
    %v1134 = vunpack.c.l.b16 %v815
    %v1135 = vunpack.c.l.b16 %v816
    %v1136 = vunpack.c.h.b16 %v816
    %v1137 = vunpack.c.l.b16 %v817
    %v1138 = vunpack.c.l.b16 %v818
    %v1139 = vunpack.c.h.b16 %v818
    %v1140 = vunpack.c.l.b16 %v819
    %v1141 = vunpack.c.l.b16 %v820
    %v1142 = vunpack.c.h.b16 %v820
    %v1143 = vunpack.c.l.b16 %v821
    %v1144 = vunpack.c.l.b16 %v822
    %v1145 = vunpack.c.h.b16 %v822
    %v1146 = vunpack.c.l.b16 %v823
    %v1147 = vunpack.c.l.b16 %v824
    %v1148 = vunpack.c.h.b16 %v824
    %v1149 = vunpack.c.l.b16 %v825
    %v1150 = vunpack.c.l.b16 %v826
    %v1151 = vunpack.c.h.b16 %v826
    %v1152 = vunpack.c.l.b16 %v827
    %v1153 = vunpack.c.l.b16 %v828
    %v1154 = vunpack.c.h.b16 %v828
    %v1155 = vunpack.c.l.b16 %v829
    %v1156 = vunpack.c.l.b16 %v830
    %v1157 = vunpack.c.h.b16 %v830
    %v1158 = vunpack.c.l.b16 %v831
    %v1159 = vunpack.c.l.b16 %v832
    %v1160 = vunpack.c.h.b16 %v832
    %v1161 = vunpack.c.l.b16 %v833
    %v1162 = vunpack.c.l.b16 %v834
    %v1163 = vunpack.c.h.b16 %v834
    %v1164 = vunpack.c.l.b16 %v835
    %v1165 = vunpack.c.l.b16 %v836
    %v1166 = vunpack.c.h.b16 %v836
    %v1167 = vunpack.c.l.b16 %v837
    %v1168 = vunpack.c.l.b16 %v838
    %v1169 = vunpack.c.h.b16 %v838
    %v1170 = vunpack.c.l.b16 %v839
    %v1171 = vunpack.c.l.b16 %v840
    %v1172 = vunpack.c.h.b16 %v840
    %v1173 = vunpack.c.l.b16 %v841
    %v1174 = vunpack.c.l.b16 %v842
    %v1175 = vunpack.c.h.b16 %v842
    %v1176 = vunpack.c.l.b16 %v843
    %v1177 = vunpack.c.l.b16 %v844
    %v1178 = vunpack.c.h.b16 %v844
    %v1179 = vunpack.c.l.b16 %v845
    %v1180 = vunpack.c.l.b16 %v846
    %v1181 = vunpack.c.h.b16 %v846
    %v1182 = vunpack.c.l.b16 %v847
    %v1183 = vunpack.c.l.b16 %v848
    %v1184 = vunpack.c.h.b16 %v848
    %v1185 = vunpack.c.l.b16 %v849
    %v1186 = vpack.c.b16 %v1000, %v997
    %v1187 = vpack.c.b16 %v1001, %v998
    %v1188 = vpack.c.b16 %v1002, %v999
    %v1189 = vpack.c.b16 %v1006, %v1003
    %v1190 = vpack.c.b16 %v1007, %v1004
    %v1191 = vpack.c.b16 %v1008, %v1005
    %v1192 = vpack.c.b16 %v1012, %v1009
    %v1193 = vpack.c.b16 %v1013, %v1010
    %v1194 = vpack.c.b16 %v1014, %v1011
    %v1195 = vpack.c.b16 %v1018, %v1015
    %v1196 = vpack.c.b16 %v1019, %v1016
    %v1197 = vpack.c.b16 %v1020, %v1017
    %v1198 = vpack.c.b16 %v1024, %v1021
    %v1199 = vpack.c.b16 %v1025, %v1022
    %v1200 = vpack.c.b16 %v1026, %v1023
    %v1201 = vpack.c.b16 %v1030, %v1027
    %v1202 = vpack.c.b16 %v1031, %v1028
    %v1203 = vpack.c.b16 %v1032, %v1029
    %v1204 = vpack.c.b16 %v1036, %v1033
    %v1205 = vpack.c.b16 %v1037, %v1034
    %v1206 = vpack.c.b16 %v1038, %v1035
    %v1207 = vpack.c.b16 %v1042, %v1039
    %v1208 = vpack.c.b16 %v1043, %v1040
    %v1209 = vpack.c.b16 %v1044, %v1041
    %v1210 = vpack.c.b16 %v1048, %v1045
    %v1211 = vpack.c.b16 %v1049, %v1046
    %v1212 = vpack.c.b16 %v1050, %v1047
    %v1213 = vpack.c.b16 %v1054, %v1051
    %v1214 = vpack.c.b16 %v1055, %v1052
    %v1215 = vpack.c.b16 %v1056, %v1053
    %v1216 = vpack.c.b16 %v1060, %v1057
    %v1217 = vpack.c.b16 %v1061, %v1058
    %v1218 = vpack.c.b16 %v1062, %v1059
    %v1219 = vpack.c.b16 %v1066, %v1063
    %v1220 = vpack.c.b16 %v1067, %v1064
    %v1221 = vpack.c.b16 %v1068, %v1065
    %v1222 = vpack.c.b16 %v1072, %v1069
    %v1223 = vpack.c.b16 %v1073, %v1070
    %v1224 = vpack.c.b16 %v1074, %v1071
    %v1225 = vpack.c.b16 %v1078, %v1075
    %v1226 = vpack.c.b16 %v1079, %v1076
    %v1227 = vpack.c.b16 %v1080, %v1077
    %v1228 = vpack.c.b16 %v1084, %v1081
    %v1229 = vpack.c.b16 %v1085, %v1082
    %v1230 = vpack.c.b16 %v1086, %v1083
    %v1231 = vpack.c.b16 %v1090, %v1087
    %v1232 = vpack.c.b16 %v1091, %v1088
    %v1233 = vpack.c.b16 %v1092, %v1089
    %v1234 = vpack.c.b16 %v1096, %v1093
    %v1235 = vpack.c.b16 %v1097, %v1094
    %v1236 = vpack.c.b16 %v1098, %v1095
    %v1237 = vpack.c.b16 %v1102, %v1099
    %v1238 = vpack.c.b16 %v1103, %v1100
    %v1239 = vpack.c.b16 %v1104, %v1101
    %v1240 = vpack.c.b16 %v1108, %v1105
    %v1241 = vpack.c.b16 %v1109, %v1106
    %v1242 = vpack.c.b16 %v1110, %v1107
    %v1243 = vpack.c.b16 %v1114, %v1111
    %v1244 = vpack.c.b16 %v1115, %v1112
    %v1245 = vpack.c.b16 %v1116, %v1113
    %v1246 = vpack.c.b16 %v1120, %v1117
    %v1247 = vpack.c.b16 %v1121, %v1118
    %v1248 = vpack.c.b16 %v1122, %v1119
    %v1249 = vpack.c.b16 %v1126, %v1123
    %v1250 = vpack.c.b16 %v1127, %v1124
    %v1251 = vpack.c.b16 %v1128, %v1125
    %v1252 = vpack.c.b16 %v1132, %v1129
    %v1253 = vpack.c.b16 %v1133, %v1130
    %v1254 = vpack.c.b16 %v1134, %v1131
    %v1255 = vpack.c.b16 %v1138, %v1135
    %v1256 = vpack.c.b16 %v1139, %v1136
    %v1257 = vpack.c.b16 %v1140, %v1137
    %v1258 = vpack.c.b16 %v1144, %v1141
    %v1259 = vpack.c.b16 %v1145, %v1142
    %v1260 = vpack.c.b16 %v1146, %v1143
    %v1261 = vpack.c.b16 %v1150, %v1147
    %v1262 = vpack.c.b16 %v1151, %v1148
    %v1263 = vpack.c.b16 %v1152, %v1149
    %v1264 = vpack.c.b16 %v1156, %v1153
    %v1265 = vpack.c.b16 %v1157, %v1154
    %v1266 = vpack.c.b16 %v1158, %v1155
    %v1267 = vpack.c.b16 %v1162, %v1159
    %v1268 = vpack.c.b16 %v1163, %v1160
    %v1269 = vpack.c.b16 %v1164, %v1161
    %v1270 = vpack.c.b16 %v1168, %v1165
    %v1271 = vpack.c.b16 %v1169, %v1166
    %v1272 = vpack.c.b16 %v1170, %v1167
    %v1273 = vpack.c.b16 %v1174, %v1171
    %v1274 = vpack.c.b16 %v1175, %v1172
    %v1275 = vpack.c.b16 %v1176, %v1173
    %v1276 = vpack.c.b16 %v1180, %v1177
    %v1277 = vpack.c.b16 %v1181, %v1178
    %v1278 = vpack.c.b16 %v1182, %v1179
    %v1279 = vpack.c.b16 %v1183, %v1183
    %v1280 = vpack.c.b16 %v1184, %v1184
    %v1281 = vpack.c.b16 %v1185, %v1185
    %vm1375 = vcmask 949248
    %v1377 = vsel %vm1375, %v853, 0
    %vm1379 = vcmask 1041408
    %v1381 = vsel %vm1379, %v1279, 0
    %v1384 = vsel %vm1379, %v1280, 0
    %v1387 = vsel %vm1379, %v1281, 0
    %1389 = vmatprep.subr.bf16.mxu0 %v1208
    %1390 = vmatpush1.bf16.msra.mxu0 %v1207
    %1391 = vmatprep.subr.bf16.mxu0 %v1205
    %1392 = vmatpush1.bf16.msra.mxu0 %v1204
    %1393 = vmatprep.subr.bf16.mxu0 %v1202
    %1394 = vmatpush1.bf16.msra.mxu0 %v1201
    %1395 = vmatprep.subr.bf16.mxu0 %v1199
    %1396 = vmatpush1.bf16.msra.mxu0 %v1198
    %1397 = vmatprep.subr.bf16.mxu0 %v1196
    %1398 = vmatpush1.bf16.msra.mxu0 %v1195
    %1399 = vmatprep.subr.bf16.mxu0 %v1193
    %1400 = vmatpush1.bf16.msra.mxu0 %v1192
    %1401 = vmatprep.subr.bf16.mxu0 %v1190
    %1402 = vmatpush1.bf16.msra.mxu0 %v1189
    %1403 = vmatprep.subr.bf16.mxu0 %v1187
    %1404 = vmatpush1.bf16.msra.mxu0 %v1186
    %1405 = vmatprep.subr.bf16.mxu0 %v1232
    %1406 = vmatpush2.bf16.msra.mxu0 %v1231
    %1407 = vmatprep.subr.bf16.mxu0 %v1229
    %1408 = vmatpush2.bf16.msra.mxu0 %v1228
    %1409 = vmatprep.subr.bf16.mxu0 %v1226
    %1410 = vmatpush2.bf16.msra.mxu0 %v1225
    %1411 = vmatprep.subr.bf16.mxu0 %v1223
    %1412 = vmatpush2.bf16.msra.mxu0 %v1222
    %1413 = vmatprep.subr.bf16.mxu0 %v1220
    %1414 = vmatpush2.bf16.msra.mxu0 %v1219
    %1415 = vmatprep.subr.bf16.mxu0 %v1217
    %1416 = vmatpush2.bf16.msra.mxu0 %v1216
    %1417 = vmatprep.subr.bf16.mxu0 %v1214
    %1418 = vmatpush2.bf16.msra.mxu0 %v1213
    %1419 = vmatprep.subr.bf16.mxu0 %v1211
    %1420 = vmatpush2.bf16.msra.mxu0 %v1210
    %1421 = vmatprep.mubr.bf16.mxu0 %v851
    %1422 = vmatmul.mubr.bf16.gmra.mxu0 %v850
    %v1423 = vpop.f32.mrf.mxu0
    %v1424 = vadd.f32 %v859, %v1423
    %v1425 = vpop.f32.mrf.mxu0
    %v1426 = vadd.f32 %v863, %v1425
    %v1427 = vpop.f32.mrf.mxu0
    %v1428 = vpop.f32.mrf.mxu0
    %1429 = vdwg.mxu0
    %1430 = vmatprep.subr.bf16.mxu0 %v1256
    %1431 = vmatpush1.bf16.msra.mxu0 %v1255
    %1432 = vmatprep.subr.bf16.mxu0 %v1253
    %1433 = vmatpush1.bf16.msra.mxu0 %v1252
    %1434 = vmatprep.subr.bf16.mxu0 %v1250
    %1435 = vmatpush1.bf16.msra.mxu0 %v1249
    %1436 = vmatprep.subr.bf16.mxu0 %v1247
    %1437 = vmatpush1.bf16.msra.mxu0 %v1246
    %1438 = vmatprep.subr.bf16.mxu0 %v1244
    %1439 = vmatpush1.bf16.msra.mxu0 %v1243
    %1440 = vmatprep.subr.bf16.mxu0 %v1241
    %1441 = vmatpush1.bf16.msra.mxu0 %v1240
    %1442 = vmatprep.subr.bf16.mxu0 %v1238
    %1443 = vmatpush1.bf16.msra.mxu0 %v1237
    %1444 = vmatprep.subr.bf16.mxu0 %v1235
    %1445 = vmatpush1.bf16.msra.mxu0 %v1234
    %1446 = vmatprep.subr.bf16.mxu0 %v1384
    %1447 = vmatpush2.bf16.msra.mxu0 %v1381
    %1448 = vmatprep.subr.bf16.mxu0 %v1277
    %1449 = vmatpush2.bf16.msra.mxu0 %v1276
    %1450 = vmatprep.subr.bf16.mxu0 %v1274
    %1451 = vmatpush2.bf16.msra.mxu0 %v1273
    %1452 = vmatprep.subr.bf16.mxu0 %v1271
    %1453 = vmatpush2.bf16.msra.mxu0 %v1270
    %1454 = vmatprep.subr.bf16.mxu0 %v1268
    %1455 = vmatpush2.bf16.msra.mxu0 %v1267
    %1456 = vmatprep.subr.bf16.mxu0 %v1265
    %1457 = vmatpush2.bf16.msra.mxu0 %v1264
    %1458 = vmatprep.subr.bf16.mxu0 %v1262
    %1459 = vmatpush2.bf16.msra.mxu0 %v1261
    %1460 = vmatprep.subr.bf16.mxu0 %v1259
    %1461 = vmatpush2.bf16.msra.mxu0 %v1258
    %1462 = vmatprep.mubr.bf16.mxu0 %v1377
    %1463 = vmatmul.mubr.bf16.gmra.mxu0 %v852
    %v1464 = vpop.f32.mrf.mxu0
    %v1465 = vadd.f32 %v1424, %v1464
    %v1466 = vpop.f32.mrf.mxu0
    %v1467 = vadd.f32 %v1426, %v1466
    %v1468 = vpop.f32.mrf.mxu0
    %v1469 = vpop.f32.mrf.mxu0
    %1470 = vdwg.mxu0
    %1471 = vmatprep.subr.bf16.mxu0 0
    %1472 = vmatpush1.bf16.msra.mxu0 %v1209
    %1473 = vmatprep.subr.bf16.mxu0 0
    %1474 = vmatpush1.bf16.msra.mxu0 %v1206
    %1475 = vmatprep.subr.bf16.mxu0 0
    %1476 = vmatpush1.bf16.msra.mxu0 %v1203
    %1477 = vmatprep.subr.bf16.mxu0 0
    %1478 = vmatpush1.bf16.msra.mxu0 %v1200
    %1479 = vmatprep.subr.bf16.mxu0 0
    %1480 = vmatpush1.bf16.msra.mxu0 %v1197
    %1481 = vmatprep.subr.bf16.mxu0 0
    %1482 = vmatpush1.bf16.msra.mxu0 %v1194
    %1483 = vmatprep.subr.bf16.mxu0 0
    %1484 = vmatpush1.bf16.msra.mxu0 %v1191
    %1485 = vmatprep.subr.bf16.mxu0 0
    %1486 = vmatpush1.bf16.msra.mxu0 %v1188
    %1487 = vmatprep.subr.bf16.mxu0 0
    %1488 = vmatpush2.bf16.msra.mxu0 %v1233
    %1489 = vmatprep.subr.bf16.mxu0 0
    %1490 = vmatpush2.bf16.msra.mxu0 %v1230
    %1491 = vmatprep.subr.bf16.mxu0 0
    %1492 = vmatpush2.bf16.msra.mxu0 %v1227
    %1493 = vmatprep.subr.bf16.mxu0 0
    %1494 = vmatpush2.bf16.msra.mxu0 %v1224
    %1495 = vmatprep.subr.bf16.mxu0 0
    %1496 = vmatpush2.bf16.msra.mxu0 %v1221
    %1497 = vmatprep.subr.bf16.mxu0 0
    %1498 = vmatpush2.bf16.msra.mxu0 %v1218
    %1499 = vmatprep.subr.bf16.mxu0 0
    %1500 = vmatpush2.bf16.msra.mxu0 %v1215
    %1501 = vmatprep.subr.bf16.mxu0 0
    %1502 = vmatpush2.bf16.msra.mxu0 %v1212
    %1503 = vmatprep.mubr.bf16.mxu0 %v851
    %1504 = vmatmul.mubr.bf16.gmra.mxu0 %v850
    %v1505 = vpop.f32.mrf.mxu0
    %v1506 = vadd.f32 %v867, %v1505
    %v1507 = vpop.f32.mrf.mxu0
    %v1508 = vpop.f32.mrf.mxu0
    %v1509 = vpop.f32.mrf.mxu0
    %1510 = vdwg.mxu0
    %1511 = vmatprep.subr.bf16.mxu0 0
    %1512 = vmatpush1.bf16.msra.mxu0 %v1257
    %1513 = vmatprep.subr.bf16.mxu0 0
    %1514 = vmatpush1.bf16.msra.mxu0 %v1254
    %1515 = vmatprep.subr.bf16.mxu0 0
    %1516 = vmatpush1.bf16.msra.mxu0 %v1251
    %1517 = vmatprep.subr.bf16.mxu0 0
    %1518 = vmatpush1.bf16.msra.mxu0 %v1248
    %1519 = vmatprep.subr.bf16.mxu0 0
    %1520 = vmatpush1.bf16.msra.mxu0 %v1245
    %1521 = vmatprep.subr.bf16.mxu0 0
    %1522 = vmatpush1.bf16.msra.mxu0 %v1242
    %1523 = vmatprep.subr.bf16.mxu0 0
    %1524 = vmatpush1.bf16.msra.mxu0 %v1239
    %1525 = vmatprep.subr.bf16.mxu0 0
    %1526 = vmatpush1.bf16.msra.mxu0 %v1236
    %1527 = vmatprep.subr.bf16.mxu0 0
    %1528 = vmatpush2.bf16.msra.mxu0 %v1387
    %1529 = vmatprep.subr.bf16.mxu0 0
    %1530 = vmatpush2.bf16.msra.mxu0 %v1278
    %1531 = vmatprep.subr.bf16.mxu0 0
    %1532 = vmatpush2.bf16.msra.mxu0 %v1275
    %1533 = vmatprep.subr.bf16.mxu0 0
    %1534 = vmatpush2.bf16.msra.mxu0 %v1272
    %1535 = vmatprep.subr.bf16.mxu0 0
    %1536 = vmatpush2.bf16.msra.mxu0 %v1269
    %1537 = vmatprep.subr.bf16.mxu0 0
    %1538 = vmatpush2.bf16.msra.mxu0 %v1266
    %1539 = vmatprep.subr.bf16.mxu0 0
    %1540 = vmatpush2.bf16.msra.mxu0 %v1263
    %1541 = vmatprep.subr.bf16.mxu0 0
    %1542 = vmatpush2.bf16.msra.mxu0 %v1260
    %1543 = vmatprep.mubr.bf16.mxu0 %v1377
    %1544 = vmatmul.mubr.bf16.gmra.mxu0 %v852
    %v1545 = vpop.f32.mrf.mxu0
    %v1546 = vadd.f32 %v1506, %v1545
    %v1547 = vpop.f32.mrf.mxu0
    %v1548 = vpop.f32.mrf.mxu0
    %v1549 = vpop.f32.mrf.mxu0
    %1550 = vdwg.mxu0
    %v1551 = vmax.f32 %v1465, 0.0
    %v1552 = vmax.f32 %v1467, 0.0
    %v1553 = vmax.f32 %v1546, 0.0
    %v1554 = vld [vmem:[%s3] sm:$0xf]
    %v1555 = vld [vmem:[%s3 + $0x4] sm:$0xf]
    %v1556 = vld [vmem:[%s3 + $0x8] sm:$0xf]
    %v1557 = vld [vmem:[%s3 + $0xc] sm:$0xf]
    %v1558 = vld [vmem:[%s3 + $0x10] sm:$0xf]
    %v1559 = vld [vmem:[%s3 + $0x14] sm:$0xf]
    %v1560 = vld [vmem:[%s3 + $0x18] sm:$0xf]
    %v1561 = vld [vmem:[%s3 + $0x1c] sm:$0xf]
    %v1562 = vld [vmem:[%s3 + $0x20] sm:$0xf]
    %v1563 = vld [vmem:[%s3 + $0x24] sm:$0xf]
    %v1564 = vld [vmem:[%s3 + $0x28] sm:$0xf]
    %v1565 = vld [vmem:[%s3 + $0x2c] sm:$0xf]
    %v1566 = vld [vmem:[%s3 + $0x30] sm:$0xf]
    %v1567 = vld [vmem:[%s3 + $0x34] sm:$0xf]
    %v1568 = vld [vmem:[%s3 + $0x38] sm:$0xf]
    %v1569 = vld [vmem:[%s3 + $0x3c] sm:$0xf]
    %v1570 = vld [vmem:[%s3 + $0x40] sm:$0xf]
    %v1571 = vld [vmem:[%s3 + $0x44] sm:$0xf]
    %v1572 = vld [vmem:[%s3 + $0x48] sm:$0xf]
    %v1573 = vld [vmem:[%s3 + $0x4c] sm:$0xf]
    %v1574 = vld [vmem:[%s3 + $0x50] sm:$0xf]
    %v1575 = vld [vmem:[%s3 + $0x54] sm:$0xf]
    %v1576 = vld [vmem:[%s3 + $0x58] sm:$0xf]
    %v1577 = vld [vmem:[%s3 + $0x5c] sm:$0xf]
    %v1578 = vld [vmem:[%s3 + $0x60] sm:$0xf]
    %v1579 = vld [vmem:[%s3 + $0x64] sm:$0xf]
    %v1580 = vld [vmem:[%s3 + $0x68] sm:$0xf]
    %v1581 = vld [vmem:[%s3 + $0x6c] sm:$0xf]
    %v1582 = vld [vmem:[%s3 + $0x70] sm:$0xf]
    %v1583 = vld [vmem:[%s3 + $0x74] sm:$0xf]
    %v1584 = vld [vmem:[%s3 + $0x78] sm:$0xf]
    %v1585 = vld [vmem:[%s3 + $0x7c] sm:$0xf]
    %v1586 = vld [vmem:[%s3 + $0x80] sm:$0xf]
    %v1587 = vld [vmem:[%s3 + $0x84] sm:$0xf]
    %v1588 = vld [vmem:[%s3 + $0x88] sm:$0xf]
    %v1589 = vld [vmem:[%s3 + $0x8c] sm:$0xf]
    %v1590 = vld [vmem:[%s3 + $0x90] sm:$0xf]
    %v1591 = vld [vmem:[%s3 + $0x94] sm:$0xf]
    %v1592 = vld [vmem:[%s3 + $0x98] sm:$0xf]
    %v1593 = vld [vmem:[%s3 + $0x9c] sm:$0xf]
    %v1594 = vld [vmem:[%s3 + $0xa0] sm:$0xf]
    %v1595 = vld [vmem:[%s3 + $0xa4] sm:$0xf]
    %v1596 = vld [vmem:[%s3 + $0xa8] sm:$0xf]
    %v1597 = vld [vmem:[%s3 + $0xac] sm:$0xf]
    %v1598 = vld [vmem:[%s3 + $0xb0] sm:$0xf]
    %v1599 = vld [vmem:[%s3 + $0xb4] sm:$0xf]
    %v1600 = vld [vmem:[%s3 + $0xb8] sm:$0xf]
    %v1601 = vld [vmem:[%s3 + $0xbc] sm:$0xf]
    %v1602 = vld [vmem:[%s3 + $0xc0] sm:$0xf]
    %v1603 = vld [vmem:[%s3 + $0xc4] sm:$0xf]
    %v1604 = vld [vmem:[%s3 + $0xc8] sm:$0xf]
    %v1605 = vld [vmem:[%s3 + $0xcc] sm:$0xf]
    %v1606 = vld [vmem:[%s3 + $0xd0] sm:$0xf]
    %v1607 = vld [vmem:[%s3 + $0xd4] sm:$0xf]
    %v1608 = vld [vmem:[%s3 + $0xd8] sm:$0xf]
    %v1609 = vld [vmem:[%s3 + $0xdc] sm:$0xf]
    %v1610 = vld [vmem:[%s3 + $0xe0] sm:$0xf]
    %v1611 = vld [vmem:[%s3 + $0xe4] sm:$0xf]
    %v1612 = vld [vmem:[%s3 + $0xe8] sm:$0xf]
    %v1613 = vld [vmem:[%s3 + $0xec] sm:$0xf]
    %v1614 = vld [vmem:[%s3 + $0xf0] sm:$0xf]
    %v1615 = vld [vmem:[%s3 + $0xf4] sm:$0xf]
    %v1616 = vld [vmem:[%s3 + $0xf8] sm:$0xf]
    %v1617 = vld [vmem:[%s3 + $0xfc] sm:$0xf]
    %v1618 = vld [vmem:[%s3 + $0x100] sm:$0xf]
    %v1619 = vld [vmem:[%s3 + $0x104] sm:$0xf]
    %v1620 = vld [vmem:[%s3 + $0x108] sm:$0xf]
    %v1621 = vld [vmem:[%s3 + $0x10c] sm:$0xf]
    %v1622 = vld [vmem:[%s3 + $0x110] sm:$0xf]
    %v1623 = vld [vmem:[%s3 + $0x114] sm:$0xf]
    %v1624 = vld [vmem:[%s3 + $0x118] sm:$0xf]
    %v1625 = vld [vmem:[%s3 + $0x11c] sm:$0xf]
    %v1626 = vld [vmem:[%s3 + $0x120] sm:$0xf]
    %v1627 = vld [vmem:[%s3 + $0x124] sm:$0xf]
    %v1628 = vld [vmem:[%s3 + $0x128] sm:$0xf]
    %v1629 = vld [vmem:[%s3 + $0x12c] sm:$0xf]
    %v1630 = vld [vmem:[%s3 + $0x130] sm:$0xf]
    %v1631 = vld [vmem:[%s3 + $0x134] sm:$0xf]
    %v1632 = vld [vmem:[%s3 + $0x138] sm:$0xf]
    %v1633 = vld [vmem:[%s3 + $0x13c] sm:$0xf]
    %v1634 = vld [vmem:[%s3 + $0x140] sm:$0xf]
    %v1635 = vld [vmem:[%s3 + $0x144] sm:$0xf]
    %v1636 = vld [vmem:[%s3 + $0x148] sm:$0xf]
    %v1637 = vld [vmem:[%s3 + $0x14c] sm:$0xf]
    %v1638 = vld [vmem:[%s3 + $0x150] sm:$0xf]
    %v1639 = vld [vmem:[%s3 + $0x154] sm:$0xf]
    %v1640 = vld [vmem:[%s3 + $0x158] sm:$0xf]
    %v1641 = vld [vmem:[%s3 + $0x15c] sm:$0xf]
    %v1642 = vld [vmem:[%s3 + $0x160] sm:$0xf]
    %v1643 = vld [vmem:[%s3 + $0x164] sm:$0xf]
    %v1644 = vld [vmem:[%s3 + $0x168] sm:$0xf]
    %v1645 = vld [vmem:[%s3 + $0x16c] sm:$0xf]
    %v1646 = vld [vmem:[%s3 + $0x170] sm:$0xf]
    %v1647 = vld [vmem:[%s3 + $0x174] sm:$0xf]
    %v1648 = vld [vmem:[%s3 + $0x178] sm:$0xf]
    %v1649 = vld [vmem:[%s3 + $0x17c] sm:$0xf]
    %v1650 = vld [vmem:[%s3 + $0x180] sm:$0xf]
    %v1651 = vld [vmem:[%s3 + $0x184] sm:$0xf]
    %v1652 = vld [vmem:[%s3 + $0x188] sm:$0xf]
    %v1653 = vld [vmem:[%s3 + $0x18c] sm:$0xf]
    %v1654 = vld [vmem:[%s3 + $0x190] sm:$0xf]
    %v1655 = vld [vmem:[%s3 + $0x194] sm:$0xf]
    %v1656 = vld [vmem:[%s3 + $0x198] sm:$0xf]
    %v1657 = vld [vmem:[%s3 + $0x19c] sm:$0xf]
    %v1658 = vld [vmem:[%s3 + $0x1a0] sm:$0xf]
    %v1659 = vld [vmem:[%s3 + $0x1a4] sm:$0xf]
    %v1660 = vld [vmem:[%s3 + $0x1a8] sm:$0xf]
    %v1661 = vld [vmem:[%s3 + $0x1ac] sm:$0xf]
    %v1662 = vld [vmem:[%s3 + $0x1b0] sm:$0xf]
    %v1663 = vld [vmem:[%s3 + $0x1b4] sm:$0xf]
    %v1664 = vld [vmem:[%s3 + $0x1b8] sm:$0xf]
    %v1665 = vld [vmem:[%s3 + $0x1bc] sm:$0xf]
    %v1666 = vld [vmem:[%s3 + $0x1c0] sm:$0x3]
    %v1667 = vpack.c.bf16 %v717, %v717
    %v1668 = vpack.c.bf16 %v718, %v718
    %v1669 = vpack.c.bf16 %v719, %v719
    %v1670 = vpack.c.bf16 %v720, %v720
    %v1671 = vpack.c.bf16 %v721, %v721
    %v1672 = vpack.c.bf16 %v722, %v722
    %v1673 = vpack.c.bf16 %v723, %v723
    %v1674 = vld [vmem:[%s7 + $0x1] ss:$0 sm:$0xff]
    %1683 = vrot.lane.b32.xlu0 %v853, 12
    %v1684 = vpop.permute.xlu0 %1683
    %1685 = vrot.lane.b32.xlu0 %v1667, 12
    %v1686 = vpop.permute.xlu0 %1685
    %1687 = vrot.lane.b32.xlu0 %v1668, 12
    %v1688 = vpop.permute.xlu0 %1687
    %1689 = vrot.lane.b32.xlu0 %v1669, 12
    %v1690 = vpop.permute.xlu0 %1689
    %1691 = vrot.lane.b32.xlu0 %v1670, 12
    %v1692 = vpop.permute.xlu0 %1691
    %1693 = vrot.lane.b32.xlu0 %v1671, 12
    %v1694 = vpop.permute.xlu0 %1693
    %1695 = vrot.lane.b32.xlu0 %v1672, 12
    %v1696 = vpop.permute.xlu0 %1695
    %1697 = vrot.lane.b32.xlu0 %v1673, 12
    %v1698 = vpop.permute.xlu0 %1697
    %vm1699 = vcmask 97280
    %v1700 = vsel %vm1699, %v1684, %v1686
    %v1701 = vsel %vm1699, %v1686, %v1688
    %v1702 = vsel %vm1699, %v1688, %v1690
    %v1703 = vsel %vm1699, %v1690, %v1692
    %v1704 = vsel %vm1699, %v1692, %v1694
    %v1705 = vsel %vm1699, %v1694, %v1696
    %v1706 = vsel %vm1699, %v1696, %v1698
    %v1827 = vunpack.c.l.b16 %v1554
    %v1828 = vunpack.c.l.b16 %v1555
    %v1829 = vunpack.c.l.b16 %v1556
    %v1830 = vunpack.c.l.b16 %v1557
    %v1831 = vunpack.c.l.b16 %v1558
    %v1832 = vunpack.c.l.b16 %v1559
    %v1833 = vunpack.c.l.b16 %v1560
    %v1834 = vunpack.c.l.b16 %v1561
    %v1835 = vunpack.c.l.b16 %v1562
    %v1836 = vunpack.c.l.b16 %v1563
    %v1837 = vunpack.c.l.b16 %v1564
    %v1838 = vunpack.c.l.b16 %v1565
    %v1839 = vunpack.c.l.b16 %v1566
    %v1840 = vunpack.c.l.b16 %v1567
    %v1841 = vunpack.c.l.b16 %v1568
    %v1842 = vunpack.c.l.b16 %v1569
    %v1843 = vunpack.c.l.b16 %v1570
    %v1844 = vunpack.c.l.b16 %v1571
    %v1845 = vunpack.c.l.b16 %v1572
    %v1846 = vunpack.c.l.b16 %v1573
    %v1847 = vunpack.c.l.b16 %v1574
    %v1848 = vunpack.c.l.b16 %v1575
    %v1849 = vunpack.c.l.b16 %v1576
    %v1850 = vunpack.c.l.b16 %v1577
    %v1851 = vunpack.c.l.b16 %v1578
    %v1852 = vunpack.c.l.b16 %v1579
    %v1853 = vunpack.c.l.b16 %v1580
    %v1854 = vunpack.c.l.b16 %v1581
    %v1855 = vunpack.c.l.b16 %v1582
    %v1856 = vunpack.c.l.b16 %v1583
    %v1857 = vunpack.c.l.b16 %v1584
    %v1858 = vunpack.c.l.b16 %v1585
    %v1859 = vunpack.c.l.b16 %v1586
    %v1860 = vunpack.c.l.b16 %v1587
    %v1861 = vunpack.c.l.b16 %v1588
    %v1862 = vunpack.c.l.b16 %v1589
    %v1863 = vunpack.c.l.b16 %v1590
    %v1864 = vunpack.c.l.b16 %v1591
    %v1865 = vunpack.c.l.b16 %v1592
    %v1866 = vunpack.c.l.b16 %v1593
    %v1867 = vunpack.c.l.b16 %v1594
    %v1868 = vunpack.c.l.b16 %v1595
    %v1869 = vunpack.c.l.b16 %v1596
    %v1870 = vunpack.c.l.b16 %v1597
    %v1871 = vunpack.c.l.b16 %v1598
    %v1872 = vunpack.c.l.b16 %v1599
    %v1873 = vunpack.c.l.b16 %v1600
    %v1874 = vunpack.c.l.b16 %v1601
    %v1875 = vunpack.c.l.b16 %v1602
    %v1876 = vunpack.c.l.b16 %v1603
    %v1877 = vunpack.c.l.b16 %v1604
    %v1878 = vunpack.c.l.b16 %v1605
    %v1879 = vunpack.c.l.b16 %v1606
    %v1880 = vunpack.c.l.b16 %v1607
    %v1881 = vunpack.c.l.b16 %v1608
    %v1882 = vunpack.c.l.b16 %v1609
    %v1883 = vunpack.c.l.b16 %v1610
    %v1884 = vunpack.c.l.b16 %v1611
    %v1885 = vunpack.c.l.b16 %v1612
    %v1886 = vunpack.c.l.b16 %v1613
    %v1887 = vunpack.c.l.b16 %v1614
    %v1888 = vunpack.c.l.b16 %v1615
    %v1889 = vunpack.c.l.b16 %v1616
    %v1890 = vunpack.c.l.b16 %v1617
    %v1891 = vunpack.c.l.b16 %v1618
    %v1892 = vunpack.c.l.b16 %v1619
    %v1893 = vunpack.c.l.b16 %v1620
    %v1894 = vunpack.c.l.b16 %v1621
    %v1895 = vunpack.c.l.b16 %v1622
    %v1896 = vunpack.c.l.b16 %v1623
    %v1897 = vunpack.c.l.b16 %v1624
    %v1898 = vunpack.c.l.b16 %v1625
    %v1899 = vunpack.c.l.b16 %v1626
    %v1900 = vunpack.c.l.b16 %v1627
    %v1901 = vunpack.c.l.b16 %v1628
    %v1902 = vunpack.c.l.b16 %v1629
    %v1903 = vunpack.c.l.b16 %v1630
    %v1904 = vunpack.c.l.b16 %v1631
    %v1905 = vunpack.c.l.b16 %v1632
    %v1906 = vunpack.c.l.b16 %v1633
    %v1907 = vunpack.c.l.b16 %v1634
    %v1908 = vunpack.c.l.b16 %v1635
    %v1909 = vunpack.c.l.b16 %v1636
    %v1910 = vunpack.c.l.b16 %v1637
    %v1911 = vunpack.c.l.b16 %v1638
    %v1912 = vunpack.c.l.b16 %v1639
    %v1913 = vunpack.c.l.b16 %v1640
    %v1914 = vunpack.c.l.b16 %v1641
    %v1915 = vunpack.c.l.b16 %v1642
    %v1916 = vunpack.c.l.b16 %v1643
    %v1917 = vunpack.c.l.b16 %v1644
    %v1918 = vunpack.c.l.b16 %v1645
    %v1919 = vunpack.c.l.b16 %v1646
    %v1920 = vunpack.c.l.b16 %v1647
    %v1921 = vunpack.c.l.b16 %v1648
    %v1922 = vunpack.c.l.b16 %v1649
    %v1923 = vunpack.c.l.b16 %v1650
    %v1924 = vunpack.c.l.b16 %v1651
    %v1925 = vunpack.c.l.b16 %v1652
    %v1926 = vunpack.c.l.b16 %v1653
    %v1927 = vunpack.c.l.b16 %v1654
    %v1928 = vunpack.c.l.b16 %v1655
    %v1929 = vunpack.c.l.b16 %v1656
    %v1930 = vunpack.c.l.b16 %v1657
    %v1931 = vunpack.c.l.b16 %v1658
    %v1932 = vunpack.c.l.b16 %v1659
    %v1933 = vunpack.c.l.b16 %v1660
    %v1934 = vunpack.c.l.b16 %v1661
    %v1935 = vunpack.c.l.b16 %v1662
    %v1936 = vunpack.c.l.b16 %v1663
    %v1937 = vunpack.c.l.b16 %v1664
    %v1938 = vunpack.c.l.b16 %v1665
    %v1939 = vunpack.c.l.b16 %v1666
    %v1940 = vpack.c.b16 %v1828, %v1827
    %v1941 = vpack.c.b16 %v1830, %v1829
    %v1942 = vpack.c.b16 %v1832, %v1831
    %v1943 = vpack.c.b16 %v1834, %v1833
    %v1944 = vpack.c.b16 %v1836, %v1835
    %v1945 = vpack.c.b16 %v1838, %v1837
    %v1946 = vpack.c.b16 %v1840, %v1839
    %v1947 = vpack.c.b16 %v1842, %v1841
    %v1948 = vpack.c.b16 %v1844, %v1843
    %v1949 = vpack.c.b16 %v1846, %v1845
    %v1950 = vpack.c.b16 %v1848, %v1847
    %v1951 = vpack.c.b16 %v1850, %v1849
    %v1952 = vpack.c.b16 %v1852, %v1851
    %v1953 = vpack.c.b16 %v1854, %v1853
    %v1954 = vpack.c.b16 %v1856, %v1855
    %v1955 = vpack.c.b16 %v1858, %v1857
    %v1956 = vpack.c.b16 %v1860, %v1859
    %v1957 = vpack.c.b16 %v1862, %v1861
    %v1958 = vpack.c.b16 %v1864, %v1863
    %v1959 = vpack.c.b16 %v1866, %v1865
    %v1960 = vpack.c.b16 %v1868, %v1867
    %v1961 = vpack.c.b16 %v1870, %v1869
    %v1962 = vpack.c.b16 %v1872, %v1871
    %v1963 = vpack.c.b16 %v1874, %v1873
    %v1964 = vpack.c.b16 %v1876, %v1875
    %v1965 = vpack.c.b16 %v1878, %v1877
    %v1966 = vpack.c.b16 %v1880, %v1879
    %v1967 = vpack.c.b16 %v1882, %v1881
    %v1968 = vpack.c.b16 %v1884, %v1883
    %v1969 = vpack.c.b16 %v1886, %v1885
    %v1970 = vpack.c.b16 %v1888, %v1887
    %v1971 = vpack.c.b16 %v1890, %v1889
    %v1972 = vpack.c.b16 %v1892, %v1891
    %v1973 = vpack.c.b16 %v1894, %v1893
    %v1974 = vpack.c.b16 %v1896, %v1895
    %v1975 = vpack.c.b16 %v1898, %v1897
    %v1976 = vpack.c.b16 %v1900, %v1899
    %v1977 = vpack.c.b16 %v1902, %v1901
    %v1978 = vpack.c.b16 %v1904, %v1903
    %v1979 = vpack.c.b16 %v1906, %v1905
    %v1980 = vpack.c.b16 %v1908, %v1907
    %v1981 = vpack.c.b16 %v1910, %v1909
    %v1982 = vpack.c.b16 %v1912, %v1911
    %v1983 = vpack.c.b16 %v1914, %v1913
    %v1984 = vpack.c.b16 %v1916, %v1915
    %v1985 = vpack.c.b16 %v1918, %v1917
    %v1986 = vpack.c.b16 %v1920, %v1919
    %v1987 = vpack.c.b16 %v1922, %v1921
    %v1988 = vpack.c.b16 %v1924, %v1923
    %v1989 = vpack.c.b16 %v1926, %v1925
    %v1990 = vpack.c.b16 %v1928, %v1927
    %v1991 = vpack.c.b16 %v1930, %v1929
    %v1992 = vpack.c.b16 %v1932, %v1931
    %v1993 = vpack.c.b16 %v1934, %v1933
    %v1994 = vpack.c.b16 %v1936, %v1935
    %v1995 = vpack.c.b16 %v1938, %v1937
    %v1996 = vpack.c.b16 %v1939, %v1939
    %vm2053 = vcmask 31744
    %v2055 = vsel %vm2053, %v1698, 0
    %v2058 = vsel %vm1379, %v1996, 0
    %2060 = vmatprep.subr.bf16.mxu0 0
    %2061 = vmatpush1.bf16.msra.mxu0 %v1947
    %2062 = vmatprep.subr.bf16.mxu0 0
    %2063 = vmatpush1.bf16.msra.mxu0 %v1946
    %2064 = vmatprep.subr.bf16.mxu0 0
    %2065 = vmatpush1.bf16.msra.mxu0 %v1945
    %2066 = vmatprep.subr.bf16.mxu0 0
    %2067 = vmatpush1.bf16.msra.mxu0 %v1944
    %2068 = vmatprep.subr.bf16.mxu0 0
    %2069 = vmatpush1.bf16.msra.mxu0 %v1943
    %2070 = vmatprep.subr.bf16.mxu0 0
    %2071 = vmatpush1.bf16.msra.mxu0 %v1942
    %2072 = vmatprep.subr.bf16.mxu0 0
    %2073 = vmatpush1.bf16.msra.mxu0 %v1941
    %2074 = vmatprep.subr.bf16.mxu0 0
    %2075 = vmatpush1.bf16.msra.mxu0 %v1940
    %2076 = vmatprep.subr.bf16.mxu0 0
    %2077 = vmatpush2.bf16.msra.mxu0 %v1955
    %2078 = vmatprep.subr.bf16.mxu0 0
    %2079 = vmatpush2.bf16.msra.mxu0 %v1954
    %2080 = vmatprep.subr.bf16.mxu0 0
    %2081 = vmatpush2.bf16.msra.mxu0 %v1953
    %2082 = vmatprep.subr.bf16.mxu0 0
    %2083 = vmatpush2.bf16.msra.mxu0 %v1952
    %2084 = vmatprep.subr.bf16.mxu0 0
    %2085 = vmatpush2.bf16.msra.mxu0 %v1951
    %2086 = vmatprep.subr.bf16.mxu0 0
    %2087 = vmatpush2.bf16.msra.mxu0 %v1950
    %2088 = vmatprep.subr.bf16.mxu0 0
    %2089 = vmatpush2.bf16.msra.mxu0 %v1949
    %2090 = vmatprep.subr.bf16.mxu0 0
    %2091 = vmatpush2.bf16.msra.mxu0 %v1948
    %2092 = vmatprep.mubr.bf16.mxu0 %v1701
    %2093 = vmatmul.mubr.bf16.gmra.mxu0 %v1700
    %v2094 = vpop.f32.mrf.mxu0
    %v2095 = vadd.f32 %v1674, %v2094
    %v2096 = vpop.f32.mrf.mxu0
    %v2097 = vpop.f32.mrf.mxu0
    %v2098 = vpop.f32.mrf.mxu0
    %2099 = vdwg.mxu0
    %2100 = vmatprep.subr.bf16.mxu0 0
    %2101 = vmatpush1.bf16.msra.mxu0 %v1963
    %2102 = vmatprep.subr.bf16.mxu0 0
    %2103 = vmatpush1.bf16.msra.mxu0 %v1962
    %2104 = vmatprep.subr.bf16.mxu0 0
    %2105 = vmatpush1.bf16.msra.mxu0 %v1961
    %2106 = vmatprep.subr.bf16.mxu0 0
    %2107 = vmatpush1.bf16.msra.mxu0 %v1960
    %2108 = vmatprep.subr.bf16.mxu0 0
    %2109 = vmatpush1.bf16.msra.mxu0 %v1959
    %2110 = vmatprep.subr.bf16.mxu0 0
    %2111 = vmatpush1.bf16.msra.mxu0 %v1958
    %2112 = vmatprep.subr.bf16.mxu0 0
    %2113 = vmatpush1.bf16.msra.mxu0 %v1957
    %2114 = vmatprep.subr.bf16.mxu0 0
    %2115 = vmatpush1.bf16.msra.mxu0 %v1956
    %2116 = vmatprep.subr.bf16.mxu0 0
    %2117 = vmatpush2.bf16.msra.mxu0 %v1971
    %2118 = vmatprep.subr.bf16.mxu0 0
    %2119 = vmatpush2.bf16.msra.mxu0 %v1970
    %2120 = vmatprep.subr.bf16.mxu0 0
    %2121 = vmatpush2.bf16.msra.mxu0 %v1969
    %2122 = vmatprep.subr.bf16.mxu0 0
    %2123 = vmatpush2.bf16.msra.mxu0 %v1968
    %2124 = vmatprep.subr.bf16.mxu0 0
    %2125 = vmatpush2.bf16.msra.mxu0 %v1967
    %2126 = vmatprep.subr.bf16.mxu0 0
    %2127 = vmatpush2.bf16.msra.mxu0 %v1966
    %2128 = vmatprep.subr.bf16.mxu0 0
    %2129 = vmatpush2.bf16.msra.mxu0 %v1965
    %2130 = vmatprep.subr.bf16.mxu0 0
    %2131 = vmatpush2.bf16.msra.mxu0 %v1964
    %2132 = vmatprep.mubr.bf16.mxu0 %v1703
    %2133 = vmatmul.mubr.bf16.gmra.mxu0 %v1702
    %v2134 = vpop.f32.mrf.mxu0
    %v2135 = vadd.f32 %v2095, %v2134
    %v2136 = vpop.f32.mrf.mxu0
    %v2137 = vpop.f32.mrf.mxu0
    %v2138 = vpop.f32.mrf.mxu0
    %2139 = vdwg.mxu0
    %2140 = vmatprep.subr.bf16.mxu0 0
    %2141 = vmatpush1.bf16.msra.mxu0 %v1979
    %2142 = vmatprep.subr.bf16.mxu0 0
    %2143 = vmatpush1.bf16.msra.mxu0 %v1978
    %2144 = vmatprep.subr.bf16.mxu0 0
    %2145 = vmatpush1.bf16.msra.mxu0 %v1977
    %2146 = vmatprep.subr.bf16.mxu0 0
    %2147 = vmatpush1.bf16.msra.mxu0 %v1976
    %2148 = vmatprep.subr.bf16.mxu0 0
    %2149 = vmatpush1.bf16.msra.mxu0 %v1975
    %2150 = vmatprep.subr.bf16.mxu0 0
    %2151 = vmatpush1.bf16.msra.mxu0 %v1974
    %2152 = vmatprep.subr.bf16.mxu0 0
    %2153 = vmatpush1.bf16.msra.mxu0 %v1973
    %2154 = vmatprep.subr.bf16.mxu0 0
    %2155 = vmatpush1.bf16.msra.mxu0 %v1972
    %2156 = vmatprep.subr.bf16.mxu0 0
    %2157 = vmatpush2.bf16.msra.mxu0 %v1987
    %2158 = vmatprep.subr.bf16.mxu0 0
    %2159 = vmatpush2.bf16.msra.mxu0 %v1986
    %2160 = vmatprep.subr.bf16.mxu0 0
    %2161 = vmatpush2.bf16.msra.mxu0 %v1985
    %2162 = vmatprep.subr.bf16.mxu0 0
    %2163 = vmatpush2.bf16.msra.mxu0 %v1984
    %2164 = vmatprep.subr.bf16.mxu0 0
    %2165 = vmatpush2.bf16.msra.mxu0 %v1983
    %2166 = vmatprep.subr.bf16.mxu0 0
    %2167 = vmatpush2.bf16.msra.mxu0 %v1982
    %2168 = vmatprep.subr.bf16.mxu0 0
    %2169 = vmatpush2.bf16.msra.mxu0 %v1981
    %2170 = vmatprep.subr.bf16.mxu0 0
    %2171 = vmatpush2.bf16.msra.mxu0 %v1980
    %2172 = vmatprep.mubr.bf16.mxu0 %v1705
    %2173 = vmatmul.mubr.bf16.gmra.mxu0 %v1704
    %v2174 = vpop.f32.mrf.mxu0
    %v2175 = vadd.f32 %v2135, %v2174
    %v2176 = vpop.f32.mrf.mxu0
    %v2177 = vpop.f32.mrf.mxu0
    %v2178 = vpop.f32.mrf.mxu0
    %2179 = vdwg.mxu0
    %2180 = vmatprep.subr.bf16.mxu0 0
    %2181 = vmatpush1.bf16.msra.mxu0 %v1995
    %2182 = vmatprep.subr.bf16.mxu0 0
    %2183 = vmatpush1.bf16.msra.mxu0 %v1994
    %2184 = vmatprep.subr.bf16.mxu0 0
    %2185 = vmatpush1.bf16.msra.mxu0 %v1993
    %2186 = vmatprep.subr.bf16.mxu0 0
    %2187 = vmatpush1.bf16.msra.mxu0 %v1992
    %2188 = vmatprep.subr.bf16.mxu0 0
    %2189 = vmatpush1.bf16.msra.mxu0 %v1991
    %2190 = vmatprep.subr.bf16.mxu0 0
    %2191 = vmatpush1.bf16.msra.mxu0 %v1990
    %2192 = vmatprep.subr.bf16.mxu0 0
    %2193 = vmatpush1.bf16.msra.mxu0 %v1989
    %2194 = vmatprep.subr.bf16.mxu0 0
    %2195 = vmatpush1.bf16.msra.mxu0 %v1988
    %2196 = vmatprep.subr.bf16.mxu0 0
    %2197 = vmatpush2.bf16.msra.mxu0 0
    %2198 = vmatprep.subr.bf16.mxu0 0
    %2199 = vmatpush2.bf16.msra.mxu0 0
    %2200 = vmatprep.subr.bf16.mxu0 0
    %2201 = vmatpush2.bf16.msra.mxu0 0
    %2202 = vmatprep.subr.bf16.mxu0 0
    %2203 = vmatpush2.bf16.msra.mxu0 0
    %2204 = vmatprep.subr.bf16.mxu0 0
    %2205 = vmatpush2.bf16.msra.mxu0 0
    %2206 = vmatprep.subr.bf16.mxu0 0
    %2207 = vmatpush2.bf16.msra.mxu0 0
    %2208 = vmatprep.subr.bf16.mxu0 0
    %2209 = vmatpush2.bf16.msra.mxu0 0
    %2210 = vmatprep.subr.bf16.mxu0 0
    %2211 = vmatpush2.bf16.msra.mxu0 %v2058
    %2212 = vmatprep.mubr.bf16.mxu0 %v2055
    %2213 = vmatmul.mubr.bf16.gmra.mxu0 %v1706
    %v2214 = vpop.f32.mrf.mxu0
    %v2215 = vadd.f32 %v2175, %v2214
    %v2216 = vpop.f32.mrf.mxu0
    %v2217 = vpop.f32.mrf.mxu0
    %v2218 = vpop.f32.mrf.mxu0
    %2219 = vdwg.mxu0
    %v2220 = vmax.f32 %v2215, 0.0
    %v2221 = vld [vmem:[%s4] sm:$0xf]
    %v2222 = vld [vmem:[%s4 + $0x4] sm:$0xf]
    %v2223 = vld [vmem:[%s4 + $0x8] sm:$0xf]
    %v2224 = vld [vmem:[%s4 + $0xc] sm:$0xf]
    %v2225 = vld [vmem:[%s4 + $0x10] sm:$0xf]
    %v2226 = vld [vmem:[%s4 + $0x14] sm:$0xf]
    %v2227 = vld [vmem:[%s4 + $0x18] sm:$0xf]
    %v2228 = vld [vmem:[%s4 + $0x1c] sm:$0xf]
    %v2229 = vld [vmem:[%s4 + $0x20] sm:$0xf]
    %v2230 = vld [vmem:[%s4 + $0x24] sm:$0xf]
    %v2231 = vld [vmem:[%s4 + $0x28] sm:$0xf]
    %v2232 = vld [vmem:[%s4 + $0x2c] sm:$0xf]
    %v2233 = vld [vmem:[%s4 + $0x30] sm:$0xf]
    %v2234 = vld [vmem:[%s4 + $0x34] sm:$0xf]
    %v2235 = vld [vmem:[%s4 + $0x38] sm:$0xf]
    %v2236 = vld [vmem:[%s4 + $0x3c] sm:$0xf]
    %v2237 = vld [vmem:[%s4 + $0x40] sm:$0xf]
    %v2238 = vld [vmem:[%s4 + $0x44] sm:$0xf]
    %v2239 = vld [vmem:[%s4 + $0x48] sm:$0xf]
    %v2240 = vld [vmem:[%s4 + $0x4c] sm:$0xf]
    %v2241 = vld [vmem:[%s4 + $0x50] sm:$0xf]
    %v2242 = vld [vmem:[%s4 + $0x54] sm:$0xf]
    %v2243 = vld [vmem:[%s4 + $0x58] sm:$0xf]
    %v2244 = vld [vmem:[%s4 + $0x5c] sm:$0xf]
    %v2245 = vld [vmem:[%s4 + $0x60] sm:$0xf]
    %v2246 = vld [vmem:[%s4 + $0x64] sm:$0xf]
    %v2247 = vld [vmem:[%s4 + $0x68] sm:$0xf]
    %v2248 = vld [vmem:[%s4 + $0x6c] sm:$0xf]
    %v2249 = vld [vmem:[%s4 + $0x70] sm:$0xf]
    %v2250 = vld [vmem:[%s4 + $0x74] sm:$0xf]
    %v2251 = vld [vmem:[%s4 + $0x78] sm:$0xf]
    %v2252 = vld [vmem:[%s4 + $0x7c] sm:$0xf]
    %v2253 = vld [vmem:[%s4 + $0x80] sm:$0xf]
    %v2254 = vld [vmem:[%s4 + $0x84] sm:$0xf]
    %v2255 = vld [vmem:[%s4 + $0x88] sm:$0xf]
    %v2256 = vld [vmem:[%s4 + $0x8c] sm:$0xf]
    %v2257 = vld [vmem:[%s4 + $0x90] sm:$0xf]
    %v2258 = vld [vmem:[%s4 + $0x94] sm:$0x3]
    %v2259 = vpack.c.bf16 %v1551, %v1551
    %v2260 = vpack.c.bf16 %v1552, %v1552
    %v2261 = vpack.c.bf16 %v1553, %v1553
    %v2262 = vld [vmem:[%s7 + $0x2] ss:$0 sm:$0xff]
    %v2301 = vunpack.c.l.b16 %v2221
    %v2302 = vunpack.c.l.b16 %v2222
    %v2303 = vunpack.c.l.b16 %v2223
    %v2304 = vunpack.c.l.b16 %v2224
    %v2305 = vunpack.c.l.b16 %v2225
    %v2306 = vunpack.c.l.b16 %v2226
    %v2307 = vunpack.c.l.b16 %v2227
    %v2308 = vunpack.c.l.b16 %v2228
    %v2309 = vunpack.c.l.b16 %v2229
    %v2310 = vunpack.c.l.b16 %v2230
    %v2311 = vunpack.c.l.b16 %v2231
    %v2312 = vunpack.c.l.b16 %v2232
    %v2313 = vunpack.c.l.b16 %v2233
    %v2314 = vunpack.c.l.b16 %v2234
    %v2315 = vunpack.c.l.b16 %v2235
    %v2316 = vunpack.c.l.b16 %v2236
    %v2317 = vunpack.c.l.b16 %v2237
    %v2318 = vunpack.c.l.b16 %v2238
    %v2319 = vunpack.c.l.b16 %v2239
    %v2320 = vunpack.c.l.b16 %v2240
    %v2321 = vunpack.c.l.b16 %v2241
    %v2322 = vunpack.c.l.b16 %v2242
    %v2323 = vunpack.c.l.b16 %v2243
    %v2324 = vunpack.c.l.b16 %v2244
    %v2325 = vunpack.c.l.b16 %v2245
    %v2326 = vunpack.c.l.b16 %v2246
    %v2327 = vunpack.c.l.b16 %v2247
    %v2328 = vunpack.c.l.b16 %v2248
    %v2329 = vunpack.c.l.b16 %v2249
    %v2330 = vunpack.c.l.b16 %v2250
    %v2331 = vunpack.c.l.b16 %v2251
    %v2332 = vunpack.c.l.b16 %v2252
    %v2333 = vunpack.c.l.b16 %v2253
    %v2334 = vunpack.c.l.b16 %v2254
    %v2335 = vunpack.c.l.b16 %v2255
    %v2336 = vunpack.c.l.b16 %v2256
    %v2337 = vunpack.c.l.b16 %v2257
    %v2338 = vunpack.c.l.b16 %v2258
    %v2339 = vpack.c.b16 %v2302, %v2301
    %v2340 = vpack.c.b16 %v2304, %v2303
    %v2341 = vpack.c.b16 %v2306, %v2305
    %v2342 = vpack.c.b16 %v2308, %v2307
    %v2343 = vpack.c.b16 %v2310, %v2309
    %v2344 = vpack.c.b16 %v2312, %v2311
    %v2345 = vpack.c.b16 %v2314, %v2313
    %v2346 = vpack.c.b16 %v2316, %v2315
    %v2347 = vpack.c.b16 %v2318, %v2317
    %v2348 = vpack.c.b16 %v2320, %v2319
    %v2349 = vpack.c.b16 %v2322, %v2321
    %v2350 = vpack.c.b16 %v2324, %v2323
    %v2351 = vpack.c.b16 %v2326, %v2325
    %v2352 = vpack.c.b16 %v2328, %v2327
    %v2353 = vpack.c.b16 %v2330, %v2329
    %v2354 = vpack.c.b16 %v2332, %v2331
    %v2355 = vpack.c.b16 %v2334, %v2333
    %v2356 = vpack.c.b16 %v2336, %v2335
    %v2357 = vpack.c.b16 %v2338, %v2337
    %vm2376 = vcmask 359424
    %v2378 = vsel %vm2376, %v2261, 0
    %v2381 = vsel %vm434, %v2357, 0
    %2383 = vmatprep.subr.bf16.mxu0 0
    %2384 = vmatpush1.bf16.msra.mxu0 %v2346
    %2385 = vmatprep.subr.bf16.mxu0 0
    %2386 = vmatpush1.bf16.msra.mxu0 %v2345
    %2387 = vmatprep.subr.bf16.mxu0 0
    %2388 = vmatpush1.bf16.msra.mxu0 %v2344
    %2389 = vmatprep.subr.bf16.mxu0 0
    %2390 = vmatpush1.bf16.msra.mxu0 %v2343
    %2391 = vmatprep.subr.bf16.mxu0 0
    %2392 = vmatpush1.bf16.msra.mxu0 %v2342
    %2393 = vmatprep.subr.bf16.mxu0 0
    %2394 = vmatpush1.bf16.msra.mxu0 %v2341
    %2395 = vmatprep.subr.bf16.mxu0 0
    %2396 = vmatpush1.bf16.msra.mxu0 %v2340
    %2397 = vmatprep.subr.bf16.mxu0 0
    %2398 = vmatpush1.bf16.msra.mxu0 %v2339
    %2399 = vmatprep.subr.bf16.mxu0 0
    %2400 = vmatpush2.bf16.msra.mxu0 %v2354
    %2401 = vmatprep.subr.bf16.mxu0 0
    %2402 = vmatpush2.bf16.msra.mxu0 %v2353
    %2403 = vmatprep.subr.bf16.mxu0 0
    %2404 = vmatpush2.bf16.msra.mxu0 %v2352
    %2405 = vmatprep.subr.bf16.mxu0 0
    %2406 = vmatpush2.bf16.msra.mxu0 %v2351
    %2407 = vmatprep.subr.bf16.mxu0 0
    %2408 = vmatpush2.bf16.msra.mxu0 %v2350
    %2409 = vmatprep.subr.bf16.mxu0 0
    %2410 = vmatpush2.bf16.msra.mxu0 %v2349
    %2411 = vmatprep.subr.bf16.mxu0 0
    %2412 = vmatpush2.bf16.msra.mxu0 %v2348
    %2413 = vmatprep.subr.bf16.mxu0 0
    %2414 = vmatpush2.bf16.msra.mxu0 %v2347
    %2415 = vmatprep.mubr.bf16.mxu0 %v2260
    %2416 = vmatmul.mubr.bf16.gmra.mxu0 %v2259
    %v2417 = vpop.f32.mrf.mxu0
    %v2418 = vadd.f32 %v2262, %v2417
    %v2419 = vpop.f32.mrf.mxu0
    %v2420 = vpop.f32.mrf.mxu0
    %v2421 = vpop.f32.mrf.mxu0
    %2422 = vdwg.mxu0
    %2423 = vmatprep.subr.bf16.mxu0 0
    %2424 = vmatpush1.bf16.msra.mxu0 0
    %2425 = vmatprep.subr.bf16.mxu0 0
    %2426 = vmatpush1.bf16.msra.mxu0 0
    %2427 = vmatprep.subr.bf16.mxu0 0
    %2428 = vmatpush1.bf16.msra.mxu0 0
    %2429 = vmatprep.subr.bf16.mxu0 0
    %2430 = vmatpush1.bf16.msra.mxu0 0
    %2431 = vmatprep.subr.bf16.mxu0 0
    %2432 = vmatpush1.bf16.msra.mxu0 0
    %2433 = vmatprep.subr.bf16.mxu0 0
    %2434 = vmatpush1.bf16.msra.mxu0 %v2381
    %2435 = vmatprep.subr.bf16.mxu0 0
    %2436 = vmatpush1.bf16.msra.mxu0 %v2356
    %2437 = vmatprep.subr.bf16.mxu0 0
    %2438 = vmatpush1.bf16.msra.mxu0 %v2355
    %2439 = vmatprep.subr.bf16.mxu0 0
    %2440 = vmatpush2.bf16.msra.mxu0 0
    %2441 = vmatprep.subr.bf16.mxu0 0
    %2442 = vmatpush2.bf16.msra.mxu0 0
    %2443 = vmatprep.subr.bf16.mxu0 0
    %2444 = vmatpush2.bf16.msra.mxu0 0
    %2445 = vmatprep.subr.bf16.mxu0 0
    %2446 = vmatpush2.bf16.msra.mxu0 0
    %2447 = vmatprep.subr.bf16.mxu0 0
    %2448 = vmatpush2.bf16.msra.mxu0 0
    %2449 = vmatprep.subr.bf16.mxu0 0
    %2450 = vmatpush2.bf16.msra.mxu0 0
    %2451 = vmatprep.subr.bf16.mxu0 0
    %2452 = vmatpush2.bf16.msra.mxu0 0
    %2453 = vmatprep.subr.bf16.mxu0 0
    %2454 = vmatpush2.bf16.msra.mxu0 0
    %2455 = vmatprep.mubr.bf16.mxu0 0
    %2456 = vmatmul.mubr.bf16.gmra.mxu0 %v2378
    %v2457 = vpop.f32.mrf.mxu0
    %v2458 = vadd.f32 %v2418, %v2457
    %v2459 = vpop.f32.mrf.mxu0
    %v2460 = vpop.f32.mrf.mxu0
    %v2461 = vpop.f32.mrf.mxu0
    %2462 = vdwg.mxu0
    %v2463 = vmax.f32 %v2458, 0.0
    %2465 = vrot.lane.b32.xlu0 %v2220, 8
    %v2466 = vpop.permute.xlu0 %2465
    %vm2468 = vcmask 64512
    %v2469 = vsel %vm2468, %v2463, %v2466
    %v2470 = vld [vmem:[%s5] sm:$0xf]
    %v2471 = vld [vmem:[%s5 + $0x14] sm:$0xf]
    %v2472 = vld [vmem:[%s5 + $0x28] sm:$0xf]
    %v2473 = vld [vmem:[%s5 + $0x3c] sm:$0xf]
    %v2474 = vpack.c.bf16 %v2469, %v2469
    %v2475 = vld [vmem:[%s7 + $0x3] ss:$0 sm:$0xff]
    %v2480 = vunpack.c.l.b16 %v2470
    %v2481 = vunpack.c.l.b16 %v2471
    %v2482 = vunpack.c.l.b16 %v2472
    %v2483 = vunpack.c.l.b16 %v2473
    %v2484 = vpack.c.b16 %v2481, %v2480
    %v2485 = vpack.c.b16 %v2483, %v2482
    %vm2488 = vcmask 261120
    %v2490 = vsel %vm2488, %v2474, 0
    %2492 = vmatprep.subr.bf16.mxu0 0
    %2493 = vmatpush1.bf16.msra.mxu0 0
    %2494 = vmatprep.subr.bf16.mxu0 0
    %2495 = vmatpush1.bf16.msra.mxu0 0
    %2496 = vmatprep.subr.bf16.mxu0 0
    %2497 = vmatpush1.bf16.msra.mxu0 0
    %2498 = vmatprep.subr.bf16.mxu0 0
    %2499 = vmatpush1.bf16.msra.mxu0 0
    %2500 = vmatprep.subr.bf16.mxu0 0
    %2501 = vmatpush1.bf16.msra.mxu0 0
    %2502 = vmatprep.subr.bf16.mxu0 0
    %2503 = vmatpush1.bf16.msra.mxu0 0
    %2504 = vmatprep.subr.bf16.mxu0 0
    %2505 = vmatpush1.bf16.msra.mxu0 %v2485
    %2506 = vmatprep.subr.bf16.mxu0 0
    %2507 = vmatpush1.bf16.msra.mxu0 %v2484
    %2508 = vmatprep.subr.bf16.mxu0 0
    %2509 = vmatpush2.bf16.msra.mxu0 0
    %2510 = vmatprep.subr.bf16.mxu0 0
    %2511 = vmatpush2.bf16.msra.mxu0 0
    %2512 = vmatprep.subr.bf16.mxu0 0
    %2513 = vmatpush2.bf16.msra.mxu0 0
    %2514 = vmatprep.subr.bf16.mxu0 0
    %2515 = vmatpush2.bf16.msra.mxu0 0
    %2516 = vmatprep.subr.bf16.mxu0 0
    %2517 = vmatpush2.bf16.msra.mxu0 0
    %2518 = vmatprep.subr.bf16.mxu0 0
    %2519 = vmatpush2.bf16.msra.mxu0 0
    %2520 = vmatprep.subr.bf16.mxu0 0
    %2521 = vmatpush2.bf16.msra.mxu0 0
    %2522 = vmatprep.subr.bf16.mxu0 0
    %2523 = vmatpush2.bf16.msra.mxu0 0
    %2524 = vmatprep.mubr.bf16.mxu0 0
    %2525 = vmatmul.mubr.bf16.gmra.mxu0 %v2490
    %v2526 = vpop.f32.mrf.mxu0
    %v2527 = vadd.f32 %v2475, %v2526
    %v2528 = vpop.f32.mrf.mxu0
    %v2529 = vpop.f32.mrf.mxu0
    %v2530 = vpop.f32.mrf.mxu0
    %2531 = vdwg.mxu0
    %2533 = vrot.lane.b32.xlu0 %v2527, 96
    %v2534 = vpop.permute.xlu0 %2533
    %v2535 = vsel %vm2488, %v2527, 0
    %v2537 = vsel %vm2488, %v2534, 0
    %2539 = vmatprep.subr.mxu0 0.0
    %2540 = vmatpush1.xpose.msra.mxu0 0.0
    %2541 = vmatprep.subr.mxu0 0.0
    %2542 = vmatpush1.xpose.msra.mxu0 0.0
    %2543 = vmatprep.subr.mxu0 0.0
    %2544 = vmatpush1.xpose.msra.mxu0 0.0
    %2545 = vmatprep.subr.mxu0 0.0
    %2546 = vmatpush1.xpose.msra.mxu0 0.0
    %2547 = vmatprep.subr.mxu0 0.0
    %2548 = vmatpush1.xpose.msra.mxu0 0.0
    %2549 = vmatprep.subr.mxu0 0.0
    %2550 = vmatpush1.xpose.msra.mxu0 0.0
    %2551 = vmatprep.subr.mxu0 0.0
    %2552 = vmatpush1.xpose.msra.mxu0 0.0
    %2553 = vmatprep.subr.mxu0 0.0
    %2554 = vmatpush1.xpose.msra.mxu0 0.0
    %2555 = vmatprep.subr.mxu0 0.0
    %2556 = vmatpush1.xpose.msra.mxu0 0.0
    %2557 = vmatprep.subr.mxu0 0.0
    %2558 = vmatpush1.xpose.msra.mxu0 0.0
    %2559 = vmatprep.subr.mxu0 0.0
    %2560 = vmatpush1.xpose.msra.mxu0 0.0
    %2561 = vmatprep.subr.mxu0 0.0
    %2562 = vmatpush1.xpose.msra.mxu0 0.0
    %2563 = vmatprep.subr.mxu0 0.0
    %2564 = vmatpush1.xpose.msra.mxu0 0.0
    %2565 = vmatprep.subr.mxu0 0.0
    %2566 = vmatpush1.xpose.msra.mxu0 0.0
    %2567 = vmatprep.subr.mxu0 0.0
    %2568 = vmatpush1.xpose.msra.mxu0 0.0
    %2569 = vmatprep.subr.mxu0 0.0
    %2570 = vmatpush1.xpose.msra.mxu0 %v2537
    %2571 = vmatprep.subr.mxu0 0.0
    %2572 = vmatpush2.xpose.msra.mxu0 0.0
    %2573 = vmatprep.subr.mxu0 0.0
    %2574 = vmatpush2.xpose.msra.mxu0 0.0
    %2575 = vmatprep.subr.mxu0 0.0
    %2576 = vmatpush2.xpose.msra.mxu0 0.0
    %2577 = vmatprep.subr.mxu0 0.0
    %2578 = vmatpush2.xpose.msra.mxu0 0.0
    %2579 = vmatprep.subr.mxu0 0.0
    %2580 = vmatpush2.xpose.msra.mxu0 0.0
    %2581 = vmatprep.subr.mxu0 0.0
    %2582 = vmatpush2.xpose.msra.mxu0 0.0
    %2583 = vmatprep.subr.mxu0 0.0
    %2584 = vmatpush2.xpose.msra.mxu0 0.0
    %2585 = vmatprep.subr.mxu0 0.0
    %2586 = vmatpush2.xpose.msra.mxu0 0.0
    %2587 = vmatprep.subr.mxu0 0.0
    %2588 = vmatpush2.xpose.msra.mxu0 0.0
    %2589 = vmatprep.subr.mxu0 0.0
    %2590 = vmatpush2.xpose.msra.mxu0 0.0
    %2591 = vmatprep.subr.mxu0 0.0
    %2592 = vmatpush2.xpose.msra.mxu0 0.0
    %2593 = vmatprep.subr.mxu0 0.0
    %2594 = vmatpush2.xpose.msra.mxu0 0.0
    %2595 = vmatprep.subr.mxu0 0.0
    %2596 = vmatpush2.xpose.msra.mxu0 0.0
    %2597 = vmatprep.subr.mxu0 0.0
    %2598 = vmatpush2.xpose.msra.mxu0 0.0
    %2599 = vmatprep.subr.mxu0 0.0
    %2600 = vmatpush2.xpose.msra.mxu0 0.0
    %2601 = vmatprep.subr.mxu0 0.0
    %2602 = vmatpush2.xpose.msra.mxu0 0.0
    %2603 = vmatprep.mubr.f32.mxu0 0.0
    %2604 = vmatmul.mubr.f32.gmra.mxu0 %v2535
    %v2605 = vpop.f32.mrf.mxu0
    %v2606 = vadd.f32 0.0, %v2605
    %v2607 = vpop.f32.mrf.mxu0
    %2608 = vdwg.mxu0
    %v2609 = vmul.f32 %v2606, 0.17677669
    %v2610 = vsel %vm2468, %v2609, -inf
    %2611 = vmax.xlane.f32.xlu0 %v2610
    %v2612 = vpop.xlane.xlu0 %2611
    %v2613 = vsub.f32 %v2609, %v2612
    %v2614 = vmul.f32 %v2613, 1.442695
    %v2615 = vpow.pop %v2614
    %v2616 = vsel %vm2468, %v2615, 0.0
    %2617 = vadd.xlane.f32.xlu0 %v2616
    %v2618 = vpop.xlane.xlu0 %2617
    %v2619 = vrcp.pop %v2618
    %v2620 = vmul.f32 %v2615, %v2619
    %2621 = vrot.lane.b32.xlu0 %v2527, 64
    %v2622 = vpop.permute.xlu0 %2621
    %v2625 = vsel %vm2468, %v2620, 0
    %2627 = vmatprep.subr.mxu0 0.0
    %2628 = vmatpush1.msra.mxu0 0.0
    %2629 = vmatprep.subr.mxu0 0.0
    %2630 = vmatpush1.msra.mxu0 0.0
    %2631 = vmatprep.subr.mxu0 0.0
    %2632 = vmatpush1.msra.mxu0 0.0
    %2633 = vmatprep.subr.mxu0 0.0
    %2634 = vmatpush1.msra.mxu0 0.0
    %2635 = vmatprep.subr.mxu0 0.0
    %2636 = vmatpush1.msra.mxu0 0.0
    %2637 = vmatprep.subr.mxu0 0.0
    %2638 = vmatpush1.msra.mxu0 0.0
    %2639 = vmatprep.subr.mxu0 0.0
    %2640 = vmatpush1.msra.mxu0 0.0
    %2641 = vmatprep.subr.mxu0 0.0
    %2642 = vmatpush1.msra.mxu0 0.0
    %2643 = vmatprep.subr.mxu0 0.0
    %2644 = vmatpush1.msra.mxu0 0.0
    %2645 = vmatprep.subr.mxu0 0.0
    %2646 = vmatpush1.msra.mxu0 0.0
    %2647 = vmatprep.subr.mxu0 0.0
    %2648 = vmatpush1.msra.mxu0 0.0
    %2649 = vmatprep.subr.mxu0 0.0
    %2650 = vmatpush1.msra.mxu0 0.0
    %2651 = vmatprep.subr.mxu0 0.0
    %2652 = vmatpush1.msra.mxu0 0.0
    %2653 = vmatprep.subr.mxu0 0.0
    %2654 = vmatpush1.msra.mxu0 0.0
    %2655 = vmatprep.subr.mxu0 0.0
    %2656 = vmatpush1.msra.mxu0 0.0
    %2657 = vmatprep.subr.mxu0 0.0
    %2658 = vmatpush1.msra.mxu0 %v2622
    %2659 = vmatprep.subr.mxu0 0.0
    %2660 = vmatpush2.msra.mxu0 0.0
    %2661 = vmatprep.subr.mxu0 0.0
    %2662 = vmatpush2.msra.mxu0 0.0
    %2663 = vmatprep.subr.mxu0 0.0
    %2664 = vmatpush2.msra.mxu0 0.0
    %2665 = vmatprep.subr.mxu0 0.0
    %2666 = vmatpush2.msra.mxu0 0.0
    %2667 = vmatprep.subr.mxu0 0.0
    %2668 = vmatpush2.msra.mxu0 0.0
    %2669 = vmatprep.subr.mxu0 0.0
    %2670 = vmatpush2.msra.mxu0 0.0
    %2671 = vmatprep.subr.mxu0 0.0
    %2672 = vmatpush2.msra.mxu0 0.0
    %2673 = vmatprep.subr.mxu0 0.0
    %2674 = vmatpush2.msra.mxu0 0.0
    %2675 = vmatprep.subr.mxu0 0.0
    %2676 = vmatpush2.msra.mxu0 0.0
    %2677 = vmatprep.subr.mxu0 0.0
    %2678 = vmatpush2.msra.mxu0 0.0
    %2679 = vmatprep.subr.mxu0 0.0
    %2680 = vmatpush2.msra.mxu0 0.0
    %2681 = vmatprep.subr.mxu0 0.0
    %2682 = vmatpush2.msra.mxu0 0.0
    %2683 = vmatprep.subr.mxu0 0.0
    %2684 = vmatpush2.msra.mxu0 0.0
    %2685 = vmatprep.subr.mxu0 0.0
    %2686 = vmatpush2.msra.mxu0 0.0
    %2687 = vmatprep.subr.mxu0 0.0
    %2688 = vmatpush2.msra.mxu0 0.0
    %2689 = vmatprep.subr.mxu0 0.0
    %2690 = vmatpush2.msra.mxu0 0.0
    %2691 = vmatprep.mubr.f32.mxu0 0.0
    %2692 = vmatmul.mubr.f32.gmra.mxu0 %v2625
    %v2693 = vpop.f32.mrf.mxu0
    %v2694 = vadd.f32 0.0, %v2693
    %v2695 = vpop.f32.mrf.mxu0
    %2696 = vdwg.mxu0
    %v2697 = vld [vmem:[%s5 + $0x4] sm:$0xf]
    %v2698 = vld [vmem:[%s5 + $0x18] sm:$0xf]
    %v2699 = vld [vmem:[%s5 + $0x2c] sm:$0xf]
    %v2700 = vld [vmem:[%s5 + $0x40] sm:$0xf]
    %v2701 = vpack.c.bf16 %v2694, %v2694
    %v2706 = vunpack.c.l.b16 %v2697
    %v2707 = vunpack.c.l.b16 %v2698
    %v2708 = vunpack.c.l.b16 %v2699
    %v2709 = vunpack.c.l.b16 %v2700
    %v2710 = vpack.c.b16 %v2707, %v2706
    %v2711 = vpack.c.b16 %v2709, %v2708
    %v2715 = vsel %vm2488, %v2701, 0
    %2717 = vmatprep.subr.bf16.mxu0 0
    %2718 = vmatpush1.bf16.msra.mxu0 0
    %2719 = vmatprep.subr.bf16.mxu0 0
    %2720 = vmatpush1.bf16.msra.mxu0 0
    %2721 = vmatprep.subr.bf16.mxu0 0
    %2722 = vmatpush1.bf16.msra.mxu0 0
    %2723 = vmatprep.subr.bf16.mxu0 0
    %2724 = vmatpush1.bf16.msra.mxu0 0
    %2725 = vmatprep.subr.bf16.mxu0 0
    %2726 = vmatpush1.bf16.msra.mxu0 0
    %2727 = vmatprep.subr.bf16.mxu0 0
    %2728 = vmatpush1.bf16.msra.mxu0 0
    %2729 = vmatprep.subr.bf16.mxu0 0
    %2730 = vmatpush1.bf16.msra.mxu0 %v2711
    %2731 = vmatprep.subr.bf16.mxu0 0
    %2732 = vmatpush1.bf16.msra.mxu0 %v2710
    %2733 = vmatprep.subr.bf16.mxu0 0
    %2734 = vmatpush2.bf16.msra.mxu0 0
    %2735 = vmatprep.subr.bf16.mxu0 0
    %2736 = vmatpush2.bf16.msra.mxu0 0
    %2737 = vmatprep.subr.bf16.mxu0 0
    %2738 = vmatpush2.bf16.msra.mxu0 0
    %2739 = vmatprep.subr.bf16.mxu0 0
    %2740 = vmatpush2.bf16.msra.mxu0 0
    %2741 = vmatprep.subr.bf16.mxu0 0
    %2742 = vmatpush2.bf16.msra.mxu0 0
    %2743 = vmatprep.subr.bf16.mxu0 0
    %2744 = vmatpush2.bf16.msra.mxu0 0
    %2745 = vmatprep.subr.bf16.mxu0 0
    %2746 = vmatpush2.bf16.msra.mxu0 0
    %2747 = vmatprep.subr.bf16.mxu0 0
    %2748 = vmatpush2.bf16.msra.mxu0 0
    %2749 = vmatprep.mubr.bf16.mxu0 0
    %2750 = vmatmul.mubr.bf16.gmra.mxu0 %v2715
    %v2751 = vpop.f32.mrf.mxu0
    %v2752 = vadd.f32 0.0, %v2751
    %v2753 = vpop.f32.mrf.mxu0
    %v2754 = vpop.f32.mrf.mxu0
    %v2755 = vpop.f32.mrf.mxu0
    %2756 = vdwg.mxu0
    %v2757 = vld [vmem:[%s7 + $0x4] ss:$0 sm:$0xff]
    %v2758 = vadd.f32 %v2752, %v2757
    %v2759 = vadd.f32 %v2469, %v2758
    %v2760 = vld [vmem:[%s7 + $0x5] ss:$0 sm:$0xff]
    %v2761 = vld [vmem:[%s7 + $0x6] ss:$0 sm:$0xff]
    %v2762 = vsel %vm2488, %v2759, 0.0
    %2763 = vadd.xlane.f32.xlu0 %v2762
    %v2764 = vpop.xlane.xlu0 %2763
    %v2765 = vrcp.pop 32.0
    %v2766 = vmul.f32 %v2764, %v2765
    %v2767 = vsub.f32 %v2759, %v2766
    %v2768 = vmul.f32 %v2767, %v2767
    %v2769 = vsel %vm2488, %v2768, 0.0
    %2770 = vadd.xlane.f32.xlu0 %v2769
    %v2771 = vpop.xlane.xlu0 %2770
    %v2772 = vmul.f32 %v2771, %v2765
    %v2773 = vadd.f32 %v2772, 1e-05
    %v2774 = vrsqrt.pop %v2773
    %v2775 = vmul.f32 %v2767, %v2774
    %v2776 = vmul.f32 %v2775, %v2760
    %v2777 = vadd.f32 %v2776, %v2761
    %v2778 = vld [vmem:[%s5 + $0x8] sm:$0xff]
    %v2779 = vld [vmem:[%s5 + $0x1c] sm:$0xff]
    %v2780 = vld [vmem:[%s5 + $0x30] sm:$0xff]
    %v2781 = vld [vmem:[%s5 + $0x44] sm:$0xff]
    %v2782 = vpack.c.bf16 %v2777, %v2777
    %s2783 = scalar_lea.vmem %s7, 7
    %v2784 = vld [vmem:[%s2783] ss:$8 sm:$0x3]
    %v2786 = vlaneseq
    %v2787 = vshrl.u32 %v2786, 7
    %v2788 = vsub.s32 0, %v2787
    %v2789 = vrot.slane %v2784, %v2788
    %v2790 = vlaneseq
    %v2791 = vshrl.u32 %v2790, 7
    %v2792 = vsub.s32 1, %v2791
    %v2793 = vrot.slane %v2784, %v2792
    %v2800 = vunpack.c.l.b16 %v2778
    %v2801 = vunpack.c.h.b16 %v2778
    %v2802 = vunpack.c.l.b16 %v2779
    %v2803 = vunpack.c.h.b16 %v2779
    %v2804 = vunpack.c.l.b16 %v2780
    %v2805 = vunpack.c.h.b16 %v2780
    %v2806 = vunpack.c.l.b16 %v2781
    %v2807 = vunpack.c.h.b16 %v2781
    %v2808 = vpack.c.b16 %v2802, %v2800
    %v2809 = vpack.c.b16 %v2803, %v2801
    %v2810 = vpack.c.b16 %v2806, %v2804
    %v2811 = vpack.c.b16 %v2807, %v2805
    %v2817 = vsel %vm2488, %v2782, 0
    %2819 = vmatprep.subr.bf16.mxu0 0
    %2820 = vmatpush1.bf16.msra.mxu0 0
    %2821 = vmatprep.subr.bf16.mxu0 0
    %2822 = vmatpush1.bf16.msra.mxu0 0
    %2823 = vmatprep.subr.bf16.mxu0 0
    %2824 = vmatpush1.bf16.msra.mxu0 0
    %2825 = vmatprep.subr.bf16.mxu0 0
    %2826 = vmatpush1.bf16.msra.mxu0 0
    %2827 = vmatprep.subr.bf16.mxu0 0
    %2828 = vmatpush1.bf16.msra.mxu0 0
    %2829 = vmatprep.subr.bf16.mxu0 0
    %2830 = vmatpush1.bf16.msra.mxu0 0
    %2831 = vmatprep.subr.bf16.mxu0 %v2811
    %2832 = vmatpush1.bf16.msra.mxu0 %v2810
    %2833 = vmatprep.subr.bf16.mxu0 %v2809
    %2834 = vmatpush1.bf16.msra.mxu0 %v2808
    %2835 = vmatprep.subr.bf16.mxu0 0
    %2836 = vmatpush2.bf16.msra.mxu0 0
    %2837 = vmatprep.subr.bf16.mxu0 0
    %2838 = vmatpush2.bf16.msra.mxu0 0
    %2839 = vmatprep.subr.bf16.mxu0 0
    %2840 = vmatpush2.bf16.msra.mxu0 0
    %2841 = vmatprep.subr.bf16.mxu0 0
    %2842 = vmatpush2.bf16.msra.mxu0 0
    %2843 = vmatprep.subr.bf16.mxu0 0
    %2844 = vmatpush2.bf16.msra.mxu0 0
    %2845 = vmatprep.subr.bf16.mxu0 0
    %2846 = vmatpush2.bf16.msra.mxu0 0
    %2847 = vmatprep.subr.bf16.mxu0 0
    %2848 = vmatpush2.bf16.msra.mxu0 0
    %2849 = vmatprep.subr.bf16.mxu0 0
    %2850 = vmatpush2.bf16.msra.mxu0 0
    %2851 = vmatprep.mubr.bf16.mxu0 0
    %2852 = vmatmul.mubr.bf16.gmra.mxu0 %v2817
    %v2853 = vpop.f32.mrf.mxu0
    %v2854 = vadd.f32 %v2789, %v2853
    %v2855 = vpop.f32.mrf.mxu0
    %v2856 = vadd.f32 %v2793, %v2855
    %v2857 = vpop.f32.mrf.mxu0
    %v2858 = vpop.f32.mrf.mxu0
    %2859 = vdwg.mxu0
    %v2860 = vmax.f32 %v2854, 0.0
    %v2861 = vmax.f32 %v2856, 0.0
    %v2862 = vld [vmem:[%s6] sm:$0xf]
    %v2863 = vld [vmem:[%s6 + $0x4] sm:$0xf]
    %v2864 = vld [vmem:[%s6 + $0x8] sm:$0xf]
    %v2865 = vld [vmem:[%s6 + $0xc] sm:$0xf]
    %v2866 = vld [vmem:[%s6 + $0x10] sm:$0xf]
    %v2867 = vld [vmem:[%s6 + $0x14] sm:$0xf]
    %v2868 = vld [vmem:[%s6 + $0x18] sm:$0xf]
    %v2869 = vld [vmem:[%s6 + $0x1c] sm:$0xf]
    %v2870 = vld [vmem:[%s6 + $0x20] sm:$0xf]
    %v2871 = vld [vmem:[%s6 + $0x24] sm:$0xf]
    %v2872 = vld [vmem:[%s6 + $0x28] sm:$0xf]
    %v2873 = vld [vmem:[%s6 + $0x2c] sm:$0xf]
    %v2874 = vld [vmem:[%s6 + $0x30] sm:$0xf]
    %v2875 = vld [vmem:[%s6 + $0x34] sm:$0xf]
    %v2876 = vld [vmem:[%s6 + $0x38] sm:$0xf]
    %v2877 = vld [vmem:[%s6 + $0x3c] sm:$0xf]
    %v2878 = vld [vmem:[%s6 + $0x40] sm:$0xf]
    %v2879 = vld [vmem:[%s6 + $0x44] sm:$0xf]
    %v2880 = vld [vmem:[%s6 + $0x48] sm:$0xf]
    %v2881 = vld [vmem:[%s6 + $0x4c] sm:$0xf]
    %v2882 = vld [vmem:[%s6 + $0x50] sm:$0xf]
    %v2883 = vld [vmem:[%s6 + $0x54] sm:$0xf]
    %v2884 = vld [vmem:[%s6 + $0x58] sm:$0xf]
    %v2885 = vld [vmem:[%s6 + $0x5c] sm:$0xf]
    %v2886 = vld [vmem:[%s6 + $0x60] sm:$0xf]
    %v2887 = vld [vmem:[%s6 + $0x64] sm:$0xf]
    %v2888 = vld [vmem:[%s6 + $0x68] sm:$0xf]
    %v2889 = vld [vmem:[%s6 + $0x6c] sm:$0xf]
    %v2890 = vld [vmem:[%s6 + $0x70] sm:$0xf]
    %v2891 = vld [vmem:[%s6 + $0x74] sm:$0xf]
    %v2892 = vld [vmem:[%s6 + $0x78] sm:$0xf]
    %v2893 = vld [vmem:[%s6 + $0x7c] sm:$0xf]
    %v2894 = vpack.c.bf16 %v2860, %v2860
    %v2895 = vpack.c.bf16 %v2861, %v2861
    %v2896 = vld [vmem:[%s7 + $0x18] ss:$0 sm:$0xff]
    %v2929 = vunpack.c.l.b16 %v2862
    %v2930 = vunpack.c.l.b16 %v2863
    %v2931 = vunpack.c.l.b16 %v2864
    %v2932 = vunpack.c.l.b16 %v2865
    %v2933 = vunpack.c.l.b16 %v2866
    %v2934 = vunpack.c.l.b16 %v2867
    %v2935 = vunpack.c.l.b16 %v2868
    %v2936 = vunpack.c.l.b16 %v2869
    %v2937 = vunpack.c.l.b16 %v2870
    %v2938 = vunpack.c.l.b16 %v2871
    %v2939 = vunpack.c.l.b16 %v2872
    %v2940 = vunpack.c.l.b16 %v2873
    %v2941 = vunpack.c.l.b16 %v2874
    %v2942 = vunpack.c.l.b16 %v2875
    %v2943 = vunpack.c.l.b16 %v2876
    %v2944 = vunpack.c.l.b16 %v2877
    %v2945 = vunpack.c.l.b16 %v2878
    %v2946 = vunpack.c.l.b16 %v2879
    %v2947 = vunpack.c.l.b16 %v2880
    %v2948 = vunpack.c.l.b16 %v2881
    %v2949 = vunpack.c.l.b16 %v2882
    %v2950 = vunpack.c.l.b16 %v2883
    %v2951 = vunpack.c.l.b16 %v2884
    %v2952 = vunpack.c.l.b16 %v2885
    %v2953 = vunpack.c.l.b16 %v2886
    %v2954 = vunpack.c.l.b16 %v2887
    %v2955 = vunpack.c.l.b16 %v2888
    %v2956 = vunpack.c.l.b16 %v2889
    %v2957 = vunpack.c.l.b16 %v2890
    %v2958 = vunpack.c.l.b16 %v2891
    %v2959 = vunpack.c.l.b16 %v2892
    %v2960 = vunpack.c.l.b16 %v2893
    %v2961 = vpack.c.b16 %v2930, %v2929
    %v2962 = vpack.c.b16 %v2932, %v2931
    %v2963 = vpack.c.b16 %v2934, %v2933
    %v2964 = vpack.c.b16 %v2936, %v2935
    %v2965 = vpack.c.b16 %v2938, %v2937
    %v2966 = vpack.c.b16 %v2940, %v2939
    %v2967 = vpack.c.b16 %v2942, %v2941
    %v2968 = vpack.c.b16 %v2944, %v2943
    %v2969 = vpack.c.b16 %v2946, %v2945
    %v2970 = vpack.c.b16 %v2948, %v2947
    %v2971 = vpack.c.b16 %v2950, %v2949
    %v2972 = vpack.c.b16 %v2952, %v2951
    %v2973 = vpack.c.b16 %v2954, %v2953
    %v2974 = vpack.c.b16 %v2956, %v2955
    %v2975 = vpack.c.b16 %v2958, %v2957
    %v2976 = vpack.c.b16 %v2960, %v2959
    %2993 = vmatprep.subr.bf16.mxu0 0
    %2994 = vmatpush1.bf16.msra.mxu0 %v2968
    %2995 = vmatprep.subr.bf16.mxu0 0
    %2996 = vmatpush1.bf16.msra.mxu0 %v2967
    %2997 = vmatprep.subr.bf16.mxu0 0
    %2998 = vmatpush1.bf16.msra.mxu0 %v2966
    %2999 = vmatprep.subr.bf16.mxu0 0
    %3000 = vmatpush1.bf16.msra.mxu0 %v2965
    %3001 = vmatprep.subr.bf16.mxu0 0
    %3002 = vmatpush1.bf16.msra.mxu0 %v2964
    %3003 = vmatprep.subr.bf16.mxu0 0
    %3004 = vmatpush1.bf16.msra.mxu0 %v2963
    %3005 = vmatprep.subr.bf16.mxu0 0
    %3006 = vmatpush1.bf16.msra.mxu0 %v2962
    %3007 = vmatprep.subr.bf16.mxu0 0
    %3008 = vmatpush1.bf16.msra.mxu0 %v2961
    %3009 = vmatprep.subr.bf16.mxu0 0
    %3010 = vmatpush2.bf16.msra.mxu0 %v2976
    %3011 = vmatprep.subr.bf16.mxu0 0
    %3012 = vmatpush2.bf16.msra.mxu0 %v2975
    %3013 = vmatprep.subr.bf16.mxu0 0
    %3014 = vmatpush2.bf16.msra.mxu0 %v2974
    %3015 = vmatprep.subr.bf16.mxu0 0
    %3016 = vmatpush2.bf16.msra.mxu0 %v2973
    %3017 = vmatprep.subr.bf16.mxu0 0
    %3018 = vmatpush2.bf16.msra.mxu0 %v2972
    %3019 = vmatprep.subr.bf16.mxu0 0
    %3020 = vmatpush2.bf16.msra.mxu0 %v2971
    %3021 = vmatprep.subr.bf16.mxu0 0
    %3022 = vmatpush2.bf16.msra.mxu0 %v2970
    %3023 = vmatprep.subr.bf16.mxu0 0
    %3024 = vmatpush2.bf16.msra.mxu0 %v2969
    %3025 = vmatprep.mubr.bf16.mxu0 %v2895
    %3026 = vmatmul.mubr.bf16.gmra.mxu0 %v2894
    %v3027 = vpop.f32.mrf.mxu0
    %v3028 = vadd.f32 %v2896, %v3027
    %v3029 = vpop.f32.mrf.mxu0
    %v3030 = vpop.f32.mrf.mxu0
    %v3031 = vpop.f32.mrf.mxu0
    %3032 = vdwg.mxu0
    %v3033 = vadd.f32 %v2777, %v3028
    %v3034 = vld [vmem:[%s7 + $0x19] ss:$0 sm:$0xff]
    %v3035 = vld [vmem:[%s7 + $0x1a] ss:$0 sm:$0xff]
    %v3036 = vsel %vm2488, %v3033, 0.0
    %3037 = vadd.xlane.f32.xlu0 %v3036
    %v3038 = vpop.xlane.xlu0 %3037
    %v3039 = vmul.f32 %v3038, %v2765
    %v3040 = vsub.f32 %v3033, %v3039
    %v3041 = vmul.f32 %v3040, %v3040
    %v3042 = vsel %vm2488, %v3041, 0.0
    %3043 = vadd.xlane.f32.xlu0 %v3042
    %v3044 = vpop.xlane.xlu0 %3043
    %v3045 = vmul.f32 %v3044, %v2765
    %v3046 = vadd.f32 %v3045, 1e-05
    %v3047 = vrsqrt.pop %v3046
    %v3048 = vmul.f32 %v3040, %v3047
    %v3049 = vmul.f32 %v3048, %v3034
    %v3050 = vadd.f32 %v3049, %v3035
    %v3051 = vld [vmem:[%s5 + $0x10] sm:$0xf]
    %v3052 = vld [vmem:[%s5 + $0x24] sm:$0xf]
    %v3053 = vld [vmem:[%s5 + $0x38] sm:$0xf]
    %v3054 = vld [vmem:[%s5 + $0x4c] sm:$0xf]
    %v3055 = vpack.c.bf16 %v3050, %v3050
    %v3056 = vld [vmem:[%s7 + $0x1b] ss:$0 sm:$0xff]
    %v3061 = vunpack.c.l.b16 %v3051
    %v3062 = vunpack.c.l.b16 %v3052
    %v3063 = vunpack.c.l.b16 %v3053
    %v3064 = vunpack.c.l.b16 %v3054
    %v3065 = vpack.c.b16 %v3062, %v3061
    %v3066 = vpack.c.b16 %v3064, %v3063
    %v3070 = vsel %vm2488, %v3055, 0
    %3072 = vmatprep.subr.bf16.mxu0 0
    %3073 = vmatpush1.bf16.msra.mxu0 0
    %3074 = vmatprep.subr.bf16.mxu0 0
    %3075 = vmatpush1.bf16.msra.mxu0 0
    %3076 = vmatprep.subr.bf16.mxu0 0
    %3077 = vmatpush1.bf16.msra.mxu0 0
    %3078 = vmatprep.subr.bf16.mxu0 0
    %3079 = vmatpush1.bf16.msra.mxu0 0
    %3080 = vmatprep.subr.bf16.mxu0 0
    %3081 = vmatpush1.bf16.msra.mxu0 0
    %3082 = vmatprep.subr.bf16.mxu0 0
    %3083 = vmatpush1.bf16.msra.mxu0 0
    %3084 = vmatprep.subr.bf16.mxu0 0
    %3085 = vmatpush1.bf16.msra.mxu0 %v3066
    %3086 = vmatprep.subr.bf16.mxu0 0
    %3087 = vmatpush1.bf16.msra.mxu0 %v3065
    %3088 = vmatprep.subr.bf16.mxu0 0
    %3089 = vmatpush2.bf16.msra.mxu0 0
    %3090 = vmatprep.subr.bf16.mxu0 0
    %3091 = vmatpush2.bf16.msra.mxu0 0
    %3092 = vmatprep.subr.bf16.mxu0 0
    %3093 = vmatpush2.bf16.msra.mxu0 0
    %3094 = vmatprep.subr.bf16.mxu0 0
    %3095 = vmatpush2.bf16.msra.mxu0 0
    %3096 = vmatprep.subr.bf16.mxu0 0
    %3097 = vmatpush2.bf16.msra.mxu0 0
    %3098 = vmatprep.subr.bf16.mxu0 0
    %3099 = vmatpush2.bf16.msra.mxu0 0
    %3100 = vmatprep.subr.bf16.mxu0 0
    %3101 = vmatpush2.bf16.msra.mxu0 0
    %3102 = vmatprep.subr.bf16.mxu0 0
    %3103 = vmatpush2.bf16.msra.mxu0 0
    %3104 = vmatprep.mubr.bf16.mxu0 0
    %3105 = vmatmul.mubr.bf16.gmra.mxu0 %v3070
    %v3106 = vpop.f32.mrf.mxu0
    %v3107 = vadd.f32 %v3056, %v3106
    %v3108 = vpop.f32.mrf.mxu0
    %v3109 = vpop.f32.mrf.mxu0
    %v3110 = vpop.f32.mrf.mxu0
    %3111 = vdwg.mxu0
    %v3112 = vxor.u32 %v3107, 2147483648
    %v3113 = vmul.f32 %v3112, 1.442695
    %v3114 = vpow.pop %v3113
    %v3115 = vadd.f32 %v3114, 1.0
    %v3116 = vrcp.pop %v3115
    %v3117 = vmul.f32 1.0, %v3116
    %3118 = vst [vmem:[#allocation2] sm:$0xff] %v3117
    // Predicated region
    $region34: #{tpu_custom_call.1} parent=1 // pred_check
      _
    $region35: #{tpu_custom_call.1} parent=1 // pred_check_branch
      %3120 = sbr.rel (0) target = $region37
    $region36: #{tpu_custom_call.1} parent=1 // pred_region
      %s3122 = ssub.s32 128, 128
      %3123 = vsyncadd [#allocation3], %s3122
      %s3125 = sshll.u32 [#allocation2], 4
      %s3126 = int_to_ptr.vmem [resolvable:$true] %s3125
      %3128 = dma.vmem_to_hbm [thread:$0]  %s3126, 128, %s8, [#allocation3]
    $region37: #{tpu_custom_call.1} parent=1 // pred_fallthru
      _
    // Predicated region
    $region38: #{tpu_custom_call.1} parent=1 // pred_check
      _
    $region39: #{tpu_custom_call.1} parent=1 // pred_check_branch
      %3130 = sbr.rel (0) target = $region41
    $region40: #{tpu_custom_call.1} parent=1 // pred_region
      %3131 = dma.done [#allocation3], 128
    $region41: #{tpu_custom_call.1} parent=1 // pred_fallthru
      _
    %3132 = vsyncpa [#allocation3], 1

</llo_original>
